<compile_context>
chip_gen: v7x
topology: tpu7x:2x2x1
jax: 0.10.0
libtpu: 0.0.40
codegen_flags: <defaults>
</compile_context>

<pallas_src>
import functools

import jax
import jax.numpy as jnp
from jax.experimental import pallas as pl
from jax.experimental.pallas import tpu as pltpu

# Shape config consistent with the module: size1 = size2 = 128, channels fixed at 256.
BATCH = 1
CHANNELS = 256
SIZE1 = 128
SIZE2 = 128
H = SIZE1 // 16          # 8
W = SIZE2 // 16          # 8
TOTAL = BATCH * CHANNELS * H * W   # 16384 elements == 64 KiB f32

LANE = 128
ROWS = TOTAL // LANE               # 128
assert ROWS * LANE == TOTAL


def sin_half_kernel(x_ref, o_ref):
    # Elementwise hot path: sin(0.5 * x) on the full lane-dense slab in one shot.
    o_ref[...] = jnp.sin(0.5 * x_ref[...])


@functools.partial(jax.jit, donate_argnums=(0,))
def _sin_half_slab(x2d):
    """Single-block Pallas call: whole (ROWS, LANE) slab in VMEM, computed in place."""
    return pl.pallas_call(
        sin_half_kernel,
        out_shape=jax.ShapeDtypeStruct((ROWS, LANE), x2d.dtype),
        in_specs=[pl.BlockSpec(memory_space=pltpu.MemorySpace.VMEM)],
        out_specs=pl.BlockSpec(memory_space=pltpu.MemorySpace.VMEM),
        input_output_aliases={0: 0},
    )(x2d)


class ParametersPallas:
    """Mirrors the PyTorch Parameters module.

    Canonical storage is the lane-dense (ROWS, 128) slab; the NCHW view is only
    materialized when forward() (the consumer) asks for it.
    """

    def __init__(self, noise_hash_flat):
        x2d = jnp.asarray(noise_hash_flat, dtype=jnp.float32).reshape(ROWS, LANE)
        self._data2d = _sin_half_slab(x2d)   # in-place sin(0.5 * x) on TPU

    @property
    def data(self):
        # Lazy NCHW view, matching torch .view(batch, 256, size1//16, size2//16).
        return self._data2d.reshape(BATCH, CHANNELS, H, W)

    def forward(self):
        return self.data


if __name__ == "__main__":
    key = jax.random.PRNGKey(0)
    # Deterministic synthetic noiseHash (flat; viewed as NCHW inside the module).
    noise_hash = jax.random.normal(key, (TOTAL,), dtype=jnp.float32)

    # Pure-JAX reference (computed before the kernel so the donated slab can't matter).
    ref = jnp.sin(0.5 * noise_hash).reshape(BATCH, CHANNELS, H, W)

    module = ParametersPallas(noise_hash)
    out = jax.block_until_ready(module.forward())

    assert out.shape == (BATCH, CHANNELS, H, W)
    assert jnp.allclose(out, ref, atol=1e-5, rtol=1e-5)

    print("KERNEL_OK")
</pallas_src>

<mosaic_0001>
module attributes {stable_mosaic.version = 11 : i64} {
  func.func @sin_half_kernel(%arg0: memref<128x128xf32, #tpu.memory_space<vmem>>, %arg1: memref<128x128xf32, #tpu.memory_space<vmem>>) attributes {dimension_semantics = [], scalar_prefetch = 0 : i64, scratch_operands = 0 : i64, tpu.core_type = #tpu.core_type<tc>} {
    %c0 = arith.constant 0 : index
    %c0_0 = arith.constant 0 : index
    %0 = vector.load %arg0[%c0, %c0_0] : memref<128x128xf32, #tpu.memory_space<vmem>>, vector<128x128xf32>
    %cst = arith.constant 5.000000e-01 : f32
    %1 = vector.broadcast %cst : f32 to vector<128x128xf32>
    %2 = arith.mulf %1, %0 : vector<128x128xf32>
    %3 = math.sin %2 : vector<128x128xf32>
    %c0_1 = arith.constant 0 : index
    %c0_2 = arith.constant 0 : index
    %4 = vector.load %arg1[%c0_1, %c0_2] : memref<128x128xf32, #tpu.memory_space<vmem>>, vector<128x128xf32>
    tpu.vector_store %arg1[%c0_1, %c0_2], %3 {strides = array<i32>} : memref<128x128xf32, #tpu.memory_space<vmem>>, vector<128x128xf32>,
    return
  }
}

</mosaic_0001>

<llo_original>
// kernel: _sin_half_slab.1
$region0: #{_sin_half_slab.1}
  #allocation0 [shape = 'u32[]', space=smem, size = 0x4, offset = 0x4, fixed_abs, tag = 'smem constant byte address 0x4 - core index']
  #allocation1 [shape = 'u32[144,128]{1,0:T(1,128)}', space=vmem, size = 0x12000, scoped, tag = 'internal scratch']
  %s0 = inlined_call_operand.hbm [shape: f32[128,128], index: 0, kind: input, shape index: {}, may-alias: {0,1}]
  %s1 = inlined_call_operand.hbm [shape: f32[128,128], index: 1, kind: output, shape index: {}, may-alias: {0,1}]
  %s2 = sld [smem:[#allocation0]]
  $region18: #{_sin_half_slab.1} parent=0
    _
  %s4 = ssub.s32 1, %s2
  %s5 = scalar_select 0, %s4, %s2
  $region1: #{_sin_half_slab.1} parent=0
    #allocation2 [shape = 'u8[65536]{0}', space=vmem, size = 0x10000, scoped, tag = 'input window, operand 0, single buffered']
    #allocation3 [shape = 's32[1]{0}', space=sflag, size = 0x4, scoped, tag = 'scoped memory for _sin_half_slab.1']
    #allocation4 [shape = 's32[1]{0}', space=sflag, size = 0x4, scoped, tag = 'scoped memory for _sin_half_slab.1']
    #allocation5 [shape = 'u8[65536]{0}', space=vmem, size = 0x10000, scoped, tag = 'output window, operand 0, single buffered']
    %6 = vsyncpa [#allocation3], 0
    %7 = vsyncpa [#allocation4], 0
    // Predicated region
    $region2: #{_sin_half_slab.1} parent=1 // pred_check
      _
    $region3: #{_sin_half_slab.1} parent=1 // pred_check_branch
      %9 = sbr.rel (0) target = $region5
    $region4: #{_sin_half_slab.1} parent=1 // pred_region
      %s11 = ssub.s32 2048, 2048
      %12 = vsyncadd [#allocation3], %s11
      %s13 = sshll.u32 [#allocation2], 4
      %s14 = int_to_ptr.vmem [resolvable:$true] %s13
      %19 = dma.hbm_to_vmem [thread:$0]  %s0, 2048, %s14, [#allocation3], 128, 128, 8
    $region5: #{_sin_half_slab.1} parent=1 // pred_fallthru
      _
    // Predicated region
    $region6: #{_sin_half_slab.1} parent=1 // pred_check
      _
    $region7: #{_sin_half_slab.1} parent=1 // pred_check_branch
      %21 = sbr.rel (0) target = $region9
    $region8: #{_sin_half_slab.1} parent=1 // pred_region
      %22 = dma.done [#allocation3], 2048
    $region9: #{_sin_half_slab.1} parent=1 // pred_fallthru
      _
    %v23 = vld [vmem:[#allocation2] sm:$0xff]
    %v24 = vld [vmem:[#allocation2 + $0x8] sm:$0xff]
    %v25 = vld [vmem:[#allocation2 + $0x10] sm:$0xff]
    %v26 = vld [vmem:[#allocation2 + $0x18] sm:$0xff]
    %v27 = vld [vmem:[#allocation2 + $0x20] sm:$0xff]
    %v28 = vld [vmem:[#allocation2 + $0x28] sm:$0xff]
    %v29 = vld [vmem:[#allocation2 + $0x30] sm:$0xff]
    %v30 = vld [vmem:[#allocation2 + $0x38] sm:$0xff]
    %v31 = vld [vmem:[#allocation2 + $0x40] sm:$0xff]
    %v32 = vld [vmem:[#allocation2 + $0x48] sm:$0xff]
    %v33 = vld [vmem:[#allocation2 + $0x50] sm:$0xff]
    %v34 = vld [vmem:[#allocation2 + $0x58] sm:$0xff]
    %v35 = vld [vmem:[#allocation2 + $0x60] sm:$0xff]
    %v36 = vld [vmem:[#allocation2 + $0x68] sm:$0xff]
    %v37 = vld [vmem:[#allocation2 + $0x70] sm:$0xff]
    %v38 = vld [vmem:[#allocation2 + $0x78] sm:$0xff]
    %v39 = vmul.f32 %v23, 0.5
    %v40 = vmul.f32 %v24, 0.5
    %v41 = vmul.f32 %v25, 0.5
    %v42 = vmul.f32 %v26, 0.5
    %v43 = vmul.f32 %v27, 0.5
    %v44 = vmul.f32 %v28, 0.5
    %v45 = vmul.f32 %v29, 0.5
    %v46 = vmul.f32 %v30, 0.5
    %v47 = vmul.f32 %v31, 0.5
    %v48 = vmul.f32 %v32, 0.5
    %v49 = vmul.f32 %v33, 0.5
    %v50 = vmul.f32 %v34, 0.5
    %v51 = vmul.f32 %v35, 0.5
    %v52 = vmul.f32 %v36, 0.5
    %v53 = vmul.f32 %v37, 0.5
    %v54 = vmul.f32 %v38, 0.5
    %v55 = vand.u32 2147483647, %v39
    %vm56 = vcmp.le.f32.partialorder %v55, 0.7853982
    %vm57 = vcmp.lt.s32.totalorder %v39, 0
    %v58 = vand.u32 %v39, 2139095040
    %v59 = vshrl.u32 %v58, 23
    %v60 = vsub.s32 %v59, 127
    %v61 = vand.u32 2147483647, %v39
    %v62 = vand.u32 %v61, 8388607
    %v63 = vor.u32 %v62, 8388608
    %v64 = vsub.s32 0, %v63
    %v65 = vadd.s32 %v60, 1
    %vm66 = vcmp.gt.s32.totalorder %v65, 0
    %v67 = vsel %vm66, %v65, 0
    %v68 = vshrl.u32 %v67, 5
    %v69 = vand.u32 %v67, 31
    %v70 = vsub.s32 32, %v69
    %v71 = vshrl.u32 683565275, %v70
    %v72 = vshll.u32 683565275, %v69
    %v73 = vshrl.u32 2475754826, %v70
    %v74 = vor.u32 %v72, %v73
    %v75 = vshll.u32 2475754826, %v69
    %v76 = vshrl.u32 2131351028, %v70
    %v77 = vor.u32 %v75, %v76
    %v78 = vshll.u32 2131351028, %v69
    %v79 = vshrl.u32 2102212464, %v70
    %v80 = vor.u32 %v78, %v79
    %v81 = vshll.u32 2102212464, %v69
    %v82 = vshrl.u32 920167782, %v70
    %v83 = vor.u32 %v81, %v82
    %v84 = vshll.u32 920167782, %v69
    %v85 = vshrl.u32 1326507024, %v70
    %v86 = vor.u32 %v84, %v85
    %vm87 = vcmp.lt.s32.totalorder %v68, 1
    %vm88 = vcmp.lt.s32.totalorder %v68, 2
    %vm89 = vcmp.lt.s32.totalorder %v68, 3
    %vm90 = vcmp.lt.s32.totalorder %v68, 4
    %v91 = vsel %vm87, %v71, %v74
    %v92 = vsel %vm90, %v80, 2102212464
    %v93 = vsel %vm89, %v77, %v92
    %v94 = vsel %vm88, %v91, %v93
    %v95 = vsel %vm87, %v74, %v77
    %v96 = vsel %vm90, %v83, 920167782
    %v97 = vsel %vm89, %v80, %v96
    %v98 = vsel %vm88, %v95, %v97
    %v99 = vsel %vm87, %v77, %v80
    %v100 = vsel %vm90, %v86, 1326507024
    %v101 = vsel %vm89, %v83, %v100
    %v102 = vsel %vm88, %v99, %v101
    %v103 = vshll.u32 %v63, 8
    %v104 = vmul.u32.u64.compose %v103, %v102
    %v105 = vextract.low.u32 %v104
    %v106 = vextract.high.u32 %v104
    %v107 = vmul.u32.u64.compose %v103, %v98
    %v108 = vextract.low.u32 %v107
    %v109 = vextract.high.u32 %v107
    %v110 = vmul.u32 %v103, %v94
    %v111 = vadd.s32 %v106, %v108
    %vm112 = vc.u32 %v106, %v108
    %v113 = vadd.s32 %v109, 1
    %v114 = vsel %vm112, %v113, %v109
    %v115 = vadd.s32 %v110, %v114
    %v116 = vadd.s32 %v115, 536870912
    %v117 = vshrl.u32 %v116, 30
    %v118 = vshll.u32 %v117, 30
    %v119 = vsub.s32 %v115, %v118
    %vm120 = vcmp.lt.s32.totalorder %v119, 0
    %v121 = vsub.s32 0, %v119
    %v122 = vsel %vm120, %v121, %v119
    %v123 = vclz %v122
    %v124 = vsub.s32 %v123, 2
    %vm125 = vcmp.gt.s32.totalorder 0, %v124
    %v126 = vsel %vm125, 0, %v124
    %v127 = vsub.s32 32, %v126
    %v128 = vshll.u32 %v119, %v126
    %v129 = vshrl.u32 %v111, %v127
    %v130 = vor.u32 %v128, %v129
    %v131 = vsub.s32 4294967266, %v126
    %v132 = vadd.s32 %v131, 127
    %v133 = vshll.u32 %v132, 23
    %v134 = vor.u32 4788187, %v133
    %v135 = vand.u32 2147483647, %v134
    %v137 = vcvt.s32.f32 %v130
    %v138 = vmul.f32 %v137, %v135
    %v139 = vxor.u32 %v138, 2147483648
    %v140 = vsel %vm57, %v139, %v138
    %v141 = vsub.s32 4, %v117
    %v142 = vsel %vm57, %v141, %v117
    %v143 = vsel %vm56, %v39, %v140
    %v144 = vsel %vm56, 0, %v142
    %v145 = vcosq.f32.pop %v143
    %v146 = vsinq.f32.pop %v143
    %vm147 = vweird.f32 %v39
    %v148 = vadd.s32 %v144, 3
    %v149 = vand.u32 %v148, 3
    %vm150 = vcmp.lt.s32.totalorder %v149, 2
    %vm151 = vcmp.eq.s32.totalorder %v149, 0
    %v152 = vxor.u32 %v146, 2147483648
    %v153 = vsel %vm151, %v145, %v152
    %vm154 = vcmp.eq.s32.totalorder %v149, 2
    %v155 = vxor.u32 %v145, 2147483648
    %v156 = vsel %vm154, %v155, %v146
    %v157 = vsel %vm150, %v153, %v156
    %v158 = vsel %vm147, nan, %v157
    %v159 = vand.u32 2147483647, %v40
    %vm160 = vcmp.le.f32.partialorder %v159, 0.7853982
    %vm161 = vcmp.lt.s32.totalorder %v40, 0
    %v162 = vand.u32 %v40, 2139095040
    %v163 = vshrl.u32 %v162, 23
    %v164 = vsub.s32 %v163, 127
    %v165 = vand.u32 2147483647, %v40
    %v166 = vand.u32 %v165, 8388607
    %v167 = vor.u32 %v166, 8388608
    %v168 = vsub.s32 0, %v167
    %v169 = vadd.s32 %v164, 1
    %vm170 = vcmp.gt.s32.totalorder %v169, 0
    %v171 = vsel %vm170, %v169, 0
    %v172 = vshrl.u32 %v171, 5
    %v173 = vand.u32 %v171, 31
    %v174 = vsub.s32 32, %v173
    %v175 = vshrl.u32 683565275, %v174
    %v176 = vshll.u32 683565275, %v173
    %v177 = vshrl.u32 2475754826, %v174
    %v178 = vor.u32 %v176, %v177
    %v179 = vshll.u32 2475754826, %v173
    %v180 = vshrl.u32 2131351028, %v174
    %v181 = vor.u32 %v179, %v180
    %v182 = vshll.u32 2131351028, %v173
    %v183 = vshrl.u32 2102212464, %v174
    %v184 = vor.u32 %v182, %v183
    %v185 = vshll.u32 2102212464, %v173
    %v186 = vshrl.u32 920167782, %v174
    %v187 = vor.u32 %v185, %v186
    %v188 = vshll.u32 920167782, %v173
    %v189 = vshrl.u32 1326507024, %v174
    %v190 = vor.u32 %v188, %v189
    %vm191 = vcmp.lt.s32.totalorder %v172, 1
    %vm192 = vcmp.lt.s32.totalorder %v172, 2
    %vm193 = vcmp.lt.s32.totalorder %v172, 3
    %vm194 = vcmp.lt.s32.totalorder %v172, 4
    %v195 = vsel %vm191, %v175, %v178
    %v196 = vsel %vm194, %v184, 2102212464
    %v197 = vsel %vm193, %v181, %v196
    %v198 = vsel %vm192, %v195, %v197
    %v199 = vsel %vm191, %v178, %v181
    %v200 = vsel %vm194, %v187, 920167782
    %v201 = vsel %vm193, %v184, %v200
    %v202 = vsel %vm192, %v199, %v201
    %v203 = vsel %vm191, %v181, %v184
    %v204 = vsel %vm194, %v190, 1326507024
    %v205 = vsel %vm193, %v187, %v204
    %v206 = vsel %vm192, %v203, %v205
    %v207 = vshll.u32 %v167, 8
    %v208 = vmul.u32.u64.compose %v207, %v206
    %v209 = vextract.low.u32 %v208
    %v210 = vextract.high.u32 %v208
    %v211 = vmul.u32.u64.compose %v207, %v202
    %v212 = vextract.low.u32 %v211
    %v213 = vextract.high.u32 %v211
    %v214 = vmul.u32 %v207, %v198
    %v215 = vadd.s32 %v210, %v212
    %vm216 = vc.u32 %v210, %v212
    %v217 = vadd.s32 %v213, 1
    %v218 = vsel %vm216, %v217, %v213
    %v219 = vadd.s32 %v214, %v218
    %v220 = vadd.s32 %v219, 536870912
    %v221 = vshrl.u32 %v220, 30
    %v222 = vshll.u32 %v221, 30
    %v223 = vsub.s32 %v219, %v222
    %vm224 = vcmp.lt.s32.totalorder %v223, 0
    %v225 = vsub.s32 0, %v223
    %v226 = vsel %vm224, %v225, %v223
    %v227 = vclz %v226
    %v228 = vsub.s32 %v227, 2
    %vm229 = vcmp.gt.s32.totalorder 0, %v228
    %v230 = vsel %vm229, 0, %v228
    %v231 = vsub.s32 32, %v230
    %v232 = vshll.u32 %v223, %v230
    %v233 = vshrl.u32 %v215, %v231
    %v234 = vor.u32 %v232, %v233
    %v235 = vsub.s32 4294967266, %v230
    %v236 = vadd.s32 %v235, 127
    %v237 = vshll.u32 %v236, 23
    %v238 = vor.u32 4788187, %v237
    %v239 = vand.u32 2147483647, %v238
    %v241 = vcvt.s32.f32 %v234
    %v242 = vmul.f32 %v241, %v239
    %v243 = vxor.u32 %v242, 2147483648
    %v244 = vsel %vm161, %v243, %v242
    %v245 = vsub.s32 4, %v221
    %v246 = vsel %vm161, %v245, %v221
    %v247 = vsel %vm160, %v40, %v244
    %v248 = vsel %vm160, 0, %v246
    %v249 = vcosq.f32.pop %v247
    %v250 = vsinq.f32.pop %v247
    %vm251 = vweird.f32 %v40
    %v252 = vadd.s32 %v248, 3
    %v253 = vand.u32 %v252, 3
    %vm254 = vcmp.lt.s32.totalorder %v253, 2
    %vm255 = vcmp.eq.s32.totalorder %v253, 0
    %v256 = vxor.u32 %v250, 2147483648
    %v257 = vsel %vm255, %v249, %v256
    %vm258 = vcmp.eq.s32.totalorder %v253, 2
    %v259 = vxor.u32 %v249, 2147483648
    %v260 = vsel %vm258, %v259, %v250
    %v261 = vsel %vm254, %v257, %v260
    %v262 = vsel %vm251, nan, %v261
    %v263 = vand.u32 2147483647, %v41
    %vm264 = vcmp.le.f32.partialorder %v263, 0.7853982
    %vm265 = vcmp.lt.s32.totalorder %v41, 0
    %v266 = vand.u32 %v41, 2139095040
    %v267 = vshrl.u32 %v266, 23
    %v268 = vsub.s32 %v267, 127
    %v269 = vand.u32 2147483647, %v41
    %v270 = vand.u32 %v269, 8388607
    %v271 = vor.u32 %v270, 8388608
    %v272 = vsub.s32 0, %v271
    %v273 = vadd.s32 %v268, 1
    %vm274 = vcmp.gt.s32.totalorder %v273, 0
    %v275 = vsel %vm274, %v273, 0
    %v276 = vshrl.u32 %v275, 5
    %v277 = vand.u32 %v275, 31
    %v278 = vsub.s32 32, %v277
    %v279 = vshrl.u32 683565275, %v278
    %v280 = vshll.u32 683565275, %v277
    %v281 = vshrl.u32 2475754826, %v278
    %v282 = vor.u32 %v280, %v281
    %v283 = vshll.u32 2475754826, %v277
    %v284 = vshrl.u32 2131351028, %v278
    %v285 = vor.u32 %v283, %v284
    %v286 = vshll.u32 2131351028, %v277
    %v287 = vshrl.u32 2102212464, %v278
    %v288 = vor.u32 %v286, %v287
    %v289 = vshll.u32 2102212464, %v277
    %v290 = vshrl.u32 920167782, %v278
    %v291 = vor.u32 %v289, %v290
    %v292 = vshll.u32 920167782, %v277
    %v293 = vshrl.u32 1326507024, %v278
    %v294 = vor.u32 %v292, %v293
    %vm295 = vcmp.lt.s32.totalorder %v276, 1
    %vm296 = vcmp.lt.s32.totalorder %v276, 2
    %vm297 = vcmp.lt.s32.totalorder %v276, 3
    %vm298 = vcmp.lt.s32.totalorder %v276, 4
    %v299 = vsel %vm295, %v279, %v282
    %v300 = vsel %vm298, %v288, 2102212464
    %v301 = vsel %vm297, %v285, %v300
    %v302 = vsel %vm296, %v299, %v301
    %v303 = vsel %vm295, %v282, %v285
    %v304 = vsel %vm298, %v291, 920167782
    %v305 = vsel %vm297, %v288, %v304
    %v306 = vsel %vm296, %v303, %v305
    %v307 = vsel %vm295, %v285, %v288
    %v308 = vsel %vm298, %v294, 1326507024
    %v309 = vsel %vm297, %v291, %v308
    %v310 = vsel %vm296, %v307, %v309
    %v311 = vshll.u32 %v271, 8
    %v312 = vmul.u32.u64.compose %v311, %v310
    %v313 = vextract.low.u32 %v312
    %v314 = vextract.high.u32 %v312
    %v315 = vmul.u32.u64.compose %v311, %v306
    %v316 = vextract.low.u32 %v315
    %v317 = vextract.high.u32 %v315
    %v318 = vmul.u32 %v311, %v302
    %v319 = vadd.s32 %v314, %v316
    %vm320 = vc.u32 %v314, %v316
    %v321 = vadd.s32 %v317, 1
    %v322 = vsel %vm320, %v321, %v317
    %v323 = vadd.s32 %v318, %v322
    %v324 = vadd.s32 %v323, 536870912
    %v325 = vshrl.u32 %v324, 30
    %v326 = vshll.u32 %v325, 30
    %v327 = vsub.s32 %v323, %v326
    %vm328 = vcmp.lt.s32.totalorder %v327, 0
    %v329 = vsub.s32 0, %v327
    %v330 = vsel %vm328, %v329, %v327
    %v331 = vclz %v330
    %v332 = vsub.s32 %v331, 2
    %vm333 = vcmp.gt.s32.totalorder 0, %v332
    %v334 = vsel %vm333, 0, %v332
    %v335 = vsub.s32 32, %v334
    %v336 = vshll.u32 %v327, %v334
    %v337 = vshrl.u32 %v319, %v335
    %v338 = vor.u32 %v336, %v337
    %v339 = vsub.s32 4294967266, %v334
    %v340 = vadd.s32 %v339, 127
    %v341 = vshll.u32 %v340, 23
    %v342 = vor.u32 4788187, %v341
    %v343 = vand.u32 2147483647, %v342
    %v345 = vcvt.s32.f32 %v338
    %v346 = vmul.f32 %v345, %v343
    %v347 = vxor.u32 %v346, 2147483648
    %v348 = vsel %vm265, %v347, %v346
    %v349 = vsub.s32 4, %v325
    %v350 = vsel %vm265, %v349, %v325
    %v351 = vsel %vm264, %v41, %v348
    %v352 = vsel %vm264, 0, %v350
    %v353 = vcosq.f32.pop %v351
    %v354 = vsinq.f32.pop %v351
    %vm355 = vweird.f32 %v41
    %v356 = vadd.s32 %v352, 3
    %v357 = vand.u32 %v356, 3
    %vm358 = vcmp.lt.s32.totalorder %v357, 2
    %vm359 = vcmp.eq.s32.totalorder %v357, 0
    %v360 = vxor.u32 %v354, 2147483648
    %v361 = vsel %vm359, %v353, %v360
    %vm362 = vcmp.eq.s32.totalorder %v357, 2
    %v363 = vxor.u32 %v353, 2147483648
    %v364 = vsel %vm362, %v363, %v354
    %v365 = vsel %vm358, %v361, %v364
    %v366 = vsel %vm355, nan, %v365
    %v367 = vand.u32 2147483647, %v42
    %vm368 = vcmp.le.f32.partialorder %v367, 0.7853982
    %vm369 = vcmp.lt.s32.totalorder %v42, 0
    %v370 = vand.u32 %v42, 2139095040
    %v371 = vshrl.u32 %v370, 23
    %v372 = vsub.s32 %v371, 127
    %v373 = vand.u32 2147483647, %v42
    %v374 = vand.u32 %v373, 8388607
    %v375 = vor.u32 %v374, 8388608
    %v376 = vsub.s32 0, %v375
    %v377 = vadd.s32 %v372, 1
    %vm378 = vcmp.gt.s32.totalorder %v377, 0
    %v379 = vsel %vm378, %v377, 0
    %v380 = vshrl.u32 %v379, 5
    %v381 = vand.u32 %v379, 31
    %v382 = vsub.s32 32, %v381
    %v383 = vshrl.u32 683565275, %v382
    %v384 = vshll.u32 683565275, %v381
    %v385 = vshrl.u32 2475754826, %v382
    %v386 = vor.u32 %v384, %v385
    %v387 = vshll.u32 2475754826, %v381
    %v388 = vshrl.u32 2131351028, %v382
    %v389 = vor.u32 %v387, %v388
    %v390 = vshll.u32 2131351028, %v381
    %v391 = vshrl.u32 2102212464, %v382
    %v392 = vor.u32 %v390, %v391
    %v393 = vshll.u32 2102212464, %v381
    %v394 = vshrl.u32 920167782, %v382
    %v395 = vor.u32 %v393, %v394
    %v396 = vshll.u32 920167782, %v381
    %v397 = vshrl.u32 1326507024, %v382
    %v398 = vor.u32 %v396, %v397
    %vm399 = vcmp.lt.s32.totalorder %v380, 1
    %vm400 = vcmp.lt.s32.totalorder %v380, 2
    %vm401 = vcmp.lt.s32.totalorder %v380, 3
    %vm402 = vcmp.lt.s32.totalorder %v380, 4
    %v403 = vsel %vm399, %v383, %v386
    %v404 = vsel %vm402, %v392, 2102212464
    %v405 = vsel %vm401, %v389, %v404
    %v406 = vsel %vm400, %v403, %v405
    %v407 = vsel %vm399, %v386, %v389
    %v408 = vsel %vm402, %v395, 920167782
    %v409 = vsel %vm401, %v392, %v408
    %v410 = vsel %vm400, %v407, %v409
    %v411 = vsel %vm399, %v389, %v392
    %v412 = vsel %vm402, %v398, 1326507024
    %v413 = vsel %vm401, %v395, %v412
    %v414 = vsel %vm400, %v411, %v413
    %v415 = vshll.u32 %v375, 8
    %v416 = vmul.u32.u64.compose %v415, %v414
    %v417 = vextract.low.u32 %v416
    %v418 = vextract.high.u32 %v416
    %v419 = vmul.u32.u64.compose %v415, %v410
    %v420 = vextract.low.u32 %v419
    %v421 = vextract.high.u32 %v419
    %v422 = vmul.u32 %v415, %v406
    %v423 = vadd.s32 %v418, %v420
    %vm424 = vc.u32 %v418, %v420
    %v425 = vadd.s32 %v421, 1
    %v426 = vsel %vm424, %v425, %v421
    %v427 = vadd.s32 %v422, %v426
    %v428 = vadd.s32 %v427, 536870912
    %v429 = vshrl.u32 %v428, 30
    %v430 = vshll.u32 %v429, 30
    %v431 = vsub.s32 %v427, %v430
    %vm432 = vcmp.lt.s32.totalorder %v431, 0
    %v433 = vsub.s32 0, %v431
    %v434 = vsel %vm432, %v433, %v431
    %v435 = vclz %v434
    %v436 = vsub.s32 %v435, 2
    %vm437 = vcmp.gt.s32.totalorder 0, %v436
    %v438 = vsel %vm437, 0, %v436
    %v439 = vsub.s32 32, %v438
    %v440 = vshll.u32 %v431, %v438
    %v441 = vshrl.u32 %v423, %v439
    %v442 = vor.u32 %v440, %v441
    %v443 = vsub.s32 4294967266, %v438
    %v444 = vadd.s32 %v443, 127
    %v445 = vshll.u32 %v444, 23
    %v446 = vor.u32 4788187, %v445
    %v447 = vand.u32 2147483647, %v446
    %v449 = vcvt.s32.f32 %v442
    %v450 = vmul.f32 %v449, %v447
    %v451 = vxor.u32 %v450, 2147483648
    %v452 = vsel %vm369, %v451, %v450
    %v453 = vsub.s32 4, %v429
    %v454 = vsel %vm369, %v453, %v429
    %v455 = vsel %vm368, %v42, %v452
    %v456 = vsel %vm368, 0, %v454
    %v457 = vcosq.f32.pop %v455
    %v458 = vsinq.f32.pop %v455
    %vm459 = vweird.f32 %v42
    %v460 = vadd.s32 %v456, 3
    %v461 = vand.u32 %v460, 3
    %vm462 = vcmp.lt.s32.totalorder %v461, 2
    %vm463 = vcmp.eq.s32.totalorder %v461, 0
    %v464 = vxor.u32 %v458, 2147483648
    %v465 = vsel %vm463, %v457, %v464
    %vm466 = vcmp.eq.s32.totalorder %v461, 2
    %v467 = vxor.u32 %v457, 2147483648
    %v468 = vsel %vm466, %v467, %v458
    %v469 = vsel %vm462, %v465, %v468
    %v470 = vsel %vm459, nan, %v469
    %v471 = vand.u32 2147483647, %v43
    %vm472 = vcmp.le.f32.partialorder %v471, 0.7853982
    %vm473 = vcmp.lt.s32.totalorder %v43, 0
    %v474 = vand.u32 %v43, 2139095040
    %v475 = vshrl.u32 %v474, 23
    %v476 = vsub.s32 %v475, 127
    %v477 = vand.u32 2147483647, %v43
    %v478 = vand.u32 %v477, 8388607
    %v479 = vor.u32 %v478, 8388608
    %v480 = vsub.s32 0, %v479
    %v481 = vadd.s32 %v476, 1
    %vm482 = vcmp.gt.s32.totalorder %v481, 0
    %v483 = vsel %vm482, %v481, 0
    %v484 = vshrl.u32 %v483, 5
    %v485 = vand.u32 %v483, 31
    %v486 = vsub.s32 32, %v485
    %v487 = vshrl.u32 683565275, %v486
    %v488 = vshll.u32 683565275, %v485
    %v489 = vshrl.u32 2475754826, %v486
    %v490 = vor.u32 %v488, %v489
    %v491 = vshll.u32 2475754826, %v485
    %v492 = vshrl.u32 2131351028, %v486
    %v493 = vor.u32 %v491, %v492
    %v494 = vshll.u32 2131351028, %v485
    %v495 = vshrl.u32 2102212464, %v486
    %v496 = vor.u32 %v494, %v495
    %v497 = vshll.u32 2102212464, %v485
    %v498 = vshrl.u32 920167782, %v486
    %v499 = vor.u32 %v497, %v498
    %v500 = vshll.u32 920167782, %v485
    %v501 = vshrl.u32 1326507024, %v486
    %v502 = vor.u32 %v500, %v501
    %vm503 = vcmp.lt.s32.totalorder %v484, 1
    %vm504 = vcmp.lt.s32.totalorder %v484, 2
    %vm505 = vcmp.lt.s32.totalorder %v484, 3
    %vm506 = vcmp.lt.s32.totalorder %v484, 4
    %v507 = vsel %vm503, %v487, %v490
    %v508 = vsel %vm506, %v496, 2102212464
    %v509 = vsel %vm505, %v493, %v508
    %v510 = vsel %vm504, %v507, %v509
    %v511 = vsel %vm503, %v490, %v493
    %v512 = vsel %vm506, %v499, 920167782
    %v513 = vsel %vm505, %v496, %v512
    %v514 = vsel %vm504, %v511, %v513
    %v515 = vsel %vm503, %v493, %v496
    %v516 = vsel %vm506, %v502, 1326507024
    %v517 = vsel %vm505, %v499, %v516
    %v518 = vsel %vm504, %v515, %v517
    %v519 = vshll.u32 %v479, 8
    %v520 = vmul.u32.u64.compose %v519, %v518
    %v521 = vextract.low.u32 %v520
    %v522 = vextract.high.u32 %v520
    %v523 = vmul.u32.u64.compose %v519, %v514
    %v524 = vextract.low.u32 %v523
    %v525 = vextract.high.u32 %v523
    %v526 = vmul.u32 %v519, %v510
    %v527 = vadd.s32 %v522, %v524
    %vm528 = vc.u32 %v522, %v524
    %v529 = vadd.s32 %v525, 1
    %v530 = vsel %vm528, %v529, %v525
    %v531 = vadd.s32 %v526, %v530
    %v532 = vadd.s32 %v531, 536870912
    %v533 = vshrl.u32 %v532, 30
    %v534 = vshll.u32 %v533, 30
    %v535 = vsub.s32 %v531, %v534
    %vm536 = vcmp.lt.s32.totalorder %v535, 0
    %v537 = vsub.s32 0, %v535
    %v538 = vsel %vm536, %v537, %v535
    %v539 = vclz %v538
    %v540 = vsub.s32 %v539, 2
    %vm541 = vcmp.gt.s32.totalorder 0, %v540
    %v542 = vsel %vm541, 0, %v540
    %v543 = vsub.s32 32, %v542
    %v544 = vshll.u32 %v535, %v542
    %v545 = vshrl.u32 %v527, %v543
    %v546 = vor.u32 %v544, %v545
    %v547 = vsub.s32 4294967266, %v542
    %v548 = vadd.s32 %v547, 127
    %v549 = vshll.u32 %v548, 23
    %v550 = vor.u32 4788187, %v549
    %v551 = vand.u32 2147483647, %v550
    %v553 = vcvt.s32.f32 %v546
    %v554 = vmul.f32 %v553, %v551
    %v555 = vxor.u32 %v554, 2147483648
    %v556 = vsel %vm473, %v555, %v554
    %v557 = vsub.s32 4, %v533
    %v558 = vsel %vm473, %v557, %v533
    %v559 = vsel %vm472, %v43, %v556
    %v560 = vsel %vm472, 0, %v558
    %v561 = vcosq.f32.pop %v559
    %v562 = vsinq.f32.pop %v559
    %vm563 = vweird.f32 %v43
    %v564 = vadd.s32 %v560, 3
    %v565 = vand.u32 %v564, 3
    %vm566 = vcmp.lt.s32.totalorder %v565, 2
    %vm567 = vcmp.eq.s32.totalorder %v565, 0
    %v568 = vxor.u32 %v562, 2147483648
    %v569 = vsel %vm567, %v561, %v568
    %vm570 = vcmp.eq.s32.totalorder %v565, 2
    %v571 = vxor.u32 %v561, 2147483648
    %v572 = vsel %vm570, %v571, %v562
    %v573 = vsel %vm566, %v569, %v572
    %v574 = vsel %vm563, nan, %v573
    %v575 = vand.u32 2147483647, %v44
    %vm576 = vcmp.le.f32.partialorder %v575, 0.7853982
    %vm577 = vcmp.lt.s32.totalorder %v44, 0
    %v578 = vand.u32 %v44, 2139095040
    %v579 = vshrl.u32 %v578, 23
    %v580 = vsub.s32 %v579, 127
    %v581 = vand.u32 2147483647, %v44
    %v582 = vand.u32 %v581, 8388607
    %v583 = vor.u32 %v582, 8388608
    %v584 = vsub.s32 0, %v583
    %v585 = vadd.s32 %v580, 1
    %vm586 = vcmp.gt.s32.totalorder %v585, 0
    %v587 = vsel %vm586, %v585, 0
    %v588 = vshrl.u32 %v587, 5
    %v589 = vand.u32 %v587, 31
    %v590 = vsub.s32 32, %v589
    %v591 = vshrl.u32 683565275, %v590
    %v592 = vshll.u32 683565275, %v589
    %v593 = vshrl.u32 2475754826, %v590
    %v594 = vor.u32 %v592, %v593
    %v595 = vshll.u32 2475754826, %v589
    %v596 = vshrl.u32 2131351028, %v590
    %v597 = vor.u32 %v595, %v596
    %v598 = vshll.u32 2131351028, %v589
    %v599 = vshrl.u32 2102212464, %v590
    %v600 = vor.u32 %v598, %v599
    %v601 = vshll.u32 2102212464, %v589
    %v602 = vshrl.u32 920167782, %v590
    %v603 = vor.u32 %v601, %v602
    %v604 = vshll.u32 920167782, %v589
    %v605 = vshrl.u32 1326507024, %v590
    %v606 = vor.u32 %v604, %v605
    %vm607 = vcmp.lt.s32.totalorder %v588, 1
    %vm608 = vcmp.lt.s32.totalorder %v588, 2
    %vm609 = vcmp.lt.s32.totalorder %v588, 3
    %vm610 = vcmp.lt.s32.totalorder %v588, 4
    %v611 = vsel %vm607, %v591, %v594
    %v612 = vsel %vm610, %v600, 2102212464
    %v613 = vsel %vm609, %v597, %v612
    %v614 = vsel %vm608, %v611, %v613
    %v615 = vsel %vm607, %v594, %v597
    %v616 = vsel %vm610, %v603, 920167782
    %v617 = vsel %vm609, %v600, %v616
    %v618 = vsel %vm608, %v615, %v617
    %v619 = vsel %vm607, %v597, %v600
    %v620 = vsel %vm610, %v606, 1326507024
    %v621 = vsel %vm609, %v603, %v620
    %v622 = vsel %vm608, %v619, %v621
    %v623 = vshll.u32 %v583, 8
    %v624 = vmul.u32.u64.compose %v623, %v622
    %v625 = vextract.low.u32 %v624
    %v626 = vextract.high.u32 %v624
    %v627 = vmul.u32.u64.compose %v623, %v618
    %v628 = vextract.low.u32 %v627
    %v629 = vextract.high.u32 %v627
    %v630 = vmul.u32 %v623, %v614
    %v631 = vadd.s32 %v626, %v628
    %vm632 = vc.u32 %v626, %v628
    %v633 = vadd.s32 %v629, 1
    %v634 = vsel %vm632, %v633, %v629
    %v635 = vadd.s32 %v630, %v634
    %v636 = vadd.s32 %v635, 536870912
    %v637 = vshrl.u32 %v636, 30
    %v638 = vshll.u32 %v637, 30
    %v639 = vsub.s32 %v635, %v638
    %vm640 = vcmp.lt.s32.totalorder %v639, 0
    %v641 = vsub.s32 0, %v639
    %v642 = vsel %vm640, %v641, %v639
    %v643 = vclz %v642
    %v644 = vsub.s32 %v643, 2
    %vm645 = vcmp.gt.s32.totalorder 0, %v644
    %v646 = vsel %vm645, 0, %v644
    %v647 = vsub.s32 32, %v646
    %v648 = vshll.u32 %v639, %v646
    %v649 = vshrl.u32 %v631, %v647
    %v650 = vor.u32 %v648, %v649
    %v651 = vsub.s32 4294967266, %v646
    %v652 = vadd.s32 %v651, 127
    %v653 = vshll.u32 %v652, 23
    %v654 = vor.u32 4788187, %v653
    %v655 = vand.u32 2147483647, %v654
    %v657 = vcvt.s32.f32 %v650
    %v658 = vmul.f32 %v657, %v655
    %v659 = vxor.u32 %v658, 2147483648
    %v660 = vsel %vm577, %v659, %v658
    %v661 = vsub.s32 4, %v637
    %v662 = vsel %vm577, %v661, %v637
    %v663 = vsel %vm576, %v44, %v660
    %v664 = vsel %vm576, 0, %v662
    %v665 = vcosq.f32.pop %v663
    %v666 = vsinq.f32.pop %v663
    %vm667 = vweird.f32 %v44
    %v668 = vadd.s32 %v664, 3
    %v669 = vand.u32 %v668, 3
    %vm670 = vcmp.lt.s32.totalorder %v669, 2
    %vm671 = vcmp.eq.s32.totalorder %v669, 0
    %v672 = vxor.u32 %v666, 2147483648
    %v673 = vsel %vm671, %v665, %v672
    %vm674 = vcmp.eq.s32.totalorder %v669, 2
    %v675 = vxor.u32 %v665, 2147483648
    %v676 = vsel %vm674, %v675, %v666
    %v677 = vsel %vm670, %v673, %v676
    %v678 = vsel %vm667, nan, %v677
    %v679 = vand.u32 2147483647, %v45
    %vm680 = vcmp.le.f32.partialorder %v679, 0.7853982
    %vm681 = vcmp.lt.s32.totalorder %v45, 0
    %v682 = vand.u32 %v45, 2139095040
    %v683 = vshrl.u32 %v682, 23
    %v684 = vsub.s32 %v683, 127
    %v685 = vand.u32 2147483647, %v45
    %v686 = vand.u32 %v685, 8388607
    %v687 = vor.u32 %v686, 8388608
    %v688 = vsub.s32 0, %v687
    %v689 = vadd.s32 %v684, 1
    %vm690 = vcmp.gt.s32.totalorder %v689, 0
    %v691 = vsel %vm690, %v689, 0
    %v692 = vshrl.u32 %v691, 5
    %v693 = vand.u32 %v691, 31
    %v694 = vsub.s32 32, %v693
    %v695 = vshrl.u32 683565275, %v694
    %v696 = vshll.u32 683565275, %v693
    %v697 = vshrl.u32 2475754826, %v694
    %v698 = vor.u32 %v696, %v697
    %v699 = vshll.u32 2475754826, %v693
    %v700 = vshrl.u32 2131351028, %v694
    %v701 = vor.u32 %v699, %v700
    %v702 = vshll.u32 2131351028, %v693
    %v703 = vshrl.u32 2102212464, %v694
    %v704 = vor.u32 %v702, %v703
    %v705 = vshll.u32 2102212464, %v693
    %v706 = vshrl.u32 920167782, %v694
    %v707 = vor.u32 %v705, %v706
    %v708 = vshll.u32 920167782, %v693
    %v709 = vshrl.u32 1326507024, %v694
    %v710 = vor.u32 %v708, %v709
    %vm711 = vcmp.lt.s32.totalorder %v692, 1
    %vm712 = vcmp.lt.s32.totalorder %v692, 2
    %vm713 = vcmp.lt.s32.totalorder %v692, 3
    %vm714 = vcmp.lt.s32.totalorder %v692, 4
    %v715 = vsel %vm711, %v695, %v698
    %v716 = vsel %vm714, %v704, 2102212464
    %v717 = vsel %vm713, %v701, %v716
    %v718 = vsel %vm712, %v715, %v717
    %v719 = vsel %vm711, %v698, %v701
    %v720 = vsel %vm714, %v707, 920167782
    %v721 = vsel %vm713, %v704, %v720
    %v722 = vsel %vm712, %v719, %v721
    %v723 = vsel %vm711, %v701, %v704
    %v724 = vsel %vm714, %v710, 1326507024
    %v725 = vsel %vm713, %v707, %v724
    %v726 = vsel %vm712, %v723, %v725
    %v727 = vshll.u32 %v687, 8
    %v728 = vmul.u32.u64.compose %v727, %v726
    %v729 = vextract.low.u32 %v728
    %v730 = vextract.high.u32 %v728
    %v731 = vmul.u32.u64.compose %v727, %v722
    %v732 = vextract.low.u32 %v731
    %v733 = vextract.high.u32 %v731
    %v734 = vmul.u32 %v727, %v718
    %v735 = vadd.s32 %v730, %v732
    %vm736 = vc.u32 %v730, %v732
    %v737 = vadd.s32 %v733, 1
    %v738 = vsel %vm736, %v737, %v733
    %v739 = vadd.s32 %v734, %v738
    %v740 = vadd.s32 %v739, 536870912
    %v741 = vshrl.u32 %v740, 30
    %v742 = vshll.u32 %v741, 30
    %v743 = vsub.s32 %v739, %v742
    %vm744 = vcmp.lt.s32.totalorder %v743, 0
    %v745 = vsub.s32 0, %v743
    %v746 = vsel %vm744, %v745, %v743
    %v747 = vclz %v746
    %v748 = vsub.s32 %v747, 2
    %vm749 = vcmp.gt.s32.totalorder 0, %v748
    %v750 = vsel %vm749, 0, %v748
    %v751 = vsub.s32 32, %v750
    %v752 = vshll.u32 %v743, %v750
    %v753 = vshrl.u32 %v735, %v751
    %v754 = vor.u32 %v752, %v753
    %v755 = vsub.s32 4294967266, %v750
    %v756 = vadd.s32 %v755, 127
    %v757 = vshll.u32 %v756, 23
    %v758 = vor.u32 4788187, %v757
    %v759 = vand.u32 2147483647, %v758
    %v761 = vcvt.s32.f32 %v754
    %v762 = vmul.f32 %v761, %v759
    %v763 = vxor.u32 %v762, 2147483648
    %v764 = vsel %vm681, %v763, %v762
    %v765 = vsub.s32 4, %v741
    %v766 = vsel %vm681, %v765, %v741
    %v767 = vsel %vm680, %v45, %v764
    %v768 = vsel %vm680, 0, %v766
    %v769 = vcosq.f32.pop %v767
    %v770 = vsinq.f32.pop %v767
    %vm771 = vweird.f32 %v45
    %v772 = vadd.s32 %v768, 3
    %v773 = vand.u32 %v772, 3
    %vm774 = vcmp.lt.s32.totalorder %v773, 2
    %vm775 = vcmp.eq.s32.totalorder %v773, 0
    %v776 = vxor.u32 %v770, 2147483648
    %v777 = vsel %vm775, %v769, %v776
    %vm778 = vcmp.eq.s32.totalorder %v773, 2
    %v779 = vxor.u32 %v769, 2147483648
    %v780 = vsel %vm778, %v779, %v770
    %v781 = vsel %vm774, %v777, %v780
    %v782 = vsel %vm771, nan, %v781
    %v783 = vand.u32 2147483647, %v46
    %vm784 = vcmp.le.f32.partialorder %v783, 0.7853982
    %vm785 = vcmp.lt.s32.totalorder %v46, 0
    %v786 = vand.u32 %v46, 2139095040
    %v787 = vshrl.u32 %v786, 23
    %v788 = vsub.s32 %v787, 127
    %v789 = vand.u32 2147483647, %v46
    %v790 = vand.u32 %v789, 8388607
    %v791 = vor.u32 %v790, 8388608
    %v792 = vsub.s32 0, %v791
    %v793 = vadd.s32 %v788, 1
    %vm794 = vcmp.gt.s32.totalorder %v793, 0
    %v795 = vsel %vm794, %v793, 0
    %v796 = vshrl.u32 %v795, 5
    %v797 = vand.u32 %v795, 31
    %v798 = vsub.s32 32, %v797
    %v799 = vshrl.u32 683565275, %v798
    %v800 = vshll.u32 683565275, %v797
    %v801 = vshrl.u32 2475754826, %v798
    %v802 = vor.u32 %v800, %v801
    %v803 = vshll.u32 2475754826, %v797
    %v804 = vshrl.u32 2131351028, %v798
    %v805 = vor.u32 %v803, %v804
    %v806 = vshll.u32 2131351028, %v797
    %v807 = vshrl.u32 2102212464, %v798
    %v808 = vor.u32 %v806, %v807
    %v809 = vshll.u32 2102212464, %v797
    %v810 = vshrl.u32 920167782, %v798
    %v811 = vor.u32 %v809, %v810
    %v812 = vshll.u32 920167782, %v797
    %v813 = vshrl.u32 1326507024, %v798
    %v814 = vor.u32 %v812, %v813
    %vm815 = vcmp.lt.s32.totalorder %v796, 1
    %vm816 = vcmp.lt.s32.totalorder %v796, 2
    %vm817 = vcmp.lt.s32.totalorder %v796, 3
    %vm818 = vcmp.lt.s32.totalorder %v796, 4
    %v819 = vsel %vm815, %v799, %v802
    %v820 = vsel %vm818, %v808, 2102212464
    %v821 = vsel %vm817, %v805, %v820
    %v822 = vsel %vm816, %v819, %v821
    %v823 = vsel %vm815, %v802, %v805
    %v824 = vsel %vm818, %v811, 920167782
    %v825 = vsel %vm817, %v808, %v824
    %v826 = vsel %vm816, %v823, %v825
    %v827 = vsel %vm815, %v805, %v808
    %v828 = vsel %vm818, %v814, 1326507024
    %v829 = vsel %vm817, %v811, %v828
    %v830 = vsel %vm816, %v827, %v829
    %v831 = vshll.u32 %v791, 8
    %v832 = vmul.u32.u64.compose %v831, %v830
    %v833 = vextract.low.u32 %v832
    %v834 = vextract.high.u32 %v832
    %v835 = vmul.u32.u64.compose %v831, %v826
    %v836 = vextract.low.u32 %v835
    %v837 = vextract.high.u32 %v835
    %v838 = vmul.u32 %v831, %v822
    %v839 = vadd.s32 %v834, %v836
    %vm840 = vc.u32 %v834, %v836
    %v841 = vadd.s32 %v837, 1
    %v842 = vsel %vm840, %v841, %v837
    %v843 = vadd.s32 %v838, %v842
    %v844 = vadd.s32 %v843, 536870912
    %v845 = vshrl.u32 %v844, 30
    %v846 = vshll.u32 %v845, 30
    %v847 = vsub.s32 %v843, %v846
    %vm848 = vcmp.lt.s32.totalorder %v847, 0
    %v849 = vsub.s32 0, %v847
    %v850 = vsel %vm848, %v849, %v847
    %v851 = vclz %v850
    %v852 = vsub.s32 %v851, 2
    %vm853 = vcmp.gt.s32.totalorder 0, %v852
    %v854 = vsel %vm853, 0, %v852
    %v855 = vsub.s32 32, %v854
    %v856 = vshll.u32 %v847, %v854
    %v857 = vshrl.u32 %v839, %v855
    %v858 = vor.u32 %v856, %v857
    %v859 = vsub.s32 4294967266, %v854
    %v860 = vadd.s32 %v859, 127
    %v861 = vshll.u32 %v860, 23
    %v862 = vor.u32 4788187, %v861
    %v863 = vand.u32 2147483647, %v862
    %v865 = vcvt.s32.f32 %v858
    %v866 = vmul.f32 %v865, %v863
    %v867 = vxor.u32 %v866, 2147483648
    %v868 = vsel %vm785, %v867, %v866
    %v869 = vsub.s32 4, %v845
    %v870 = vsel %vm785, %v869, %v845
    %v871 = vsel %vm784, %v46, %v868
    %v872 = vsel %vm784, 0, %v870
    %v873 = vcosq.f32.pop %v871
    %v874 = vsinq.f32.pop %v871
    %vm875 = vweird.f32 %v46
    %v876 = vadd.s32 %v872, 3
    %v877 = vand.u32 %v876, 3
    %vm878 = vcmp.lt.s32.totalorder %v877, 2
    %vm879 = vcmp.eq.s32.totalorder %v877, 0
    %v880 = vxor.u32 %v874, 2147483648
    %v881 = vsel %vm879, %v873, %v880
    %vm882 = vcmp.eq.s32.totalorder %v877, 2
    %v883 = vxor.u32 %v873, 2147483648
    %v884 = vsel %vm882, %v883, %v874
    %v885 = vsel %vm878, %v881, %v884
    %v886 = vsel %vm875, nan, %v885
    %v887 = vand.u32 2147483647, %v47
    %vm888 = vcmp.le.f32.partialorder %v887, 0.7853982
    %vm889 = vcmp.lt.s32.totalorder %v47, 0
    %v890 = vand.u32 %v47, 2139095040
    %v891 = vshrl.u32 %v890, 23
    %v892 = vsub.s32 %v891, 127
    %v893 = vand.u32 2147483647, %v47
    %v894 = vand.u32 %v893, 8388607
    %v895 = vor.u32 %v894, 8388608
    %v896 = vsub.s32 0, %v895
    %v897 = vadd.s32 %v892, 1
    %vm898 = vcmp.gt.s32.totalorder %v897, 0
    %v899 = vsel %vm898, %v897, 0
    %v900 = vshrl.u32 %v899, 5
    %v901 = vand.u32 %v899, 31
    %v902 = vsub.s32 32, %v901
    %v903 = vshrl.u32 683565275, %v902
    %v904 = vshll.u32 683565275, %v901
    %v905 = vshrl.u32 2475754826, %v902
    %v906 = vor.u32 %v904, %v905
    %v907 = vshll.u32 2475754826, %v901
    %v908 = vshrl.u32 2131351028, %v902
    %v909 = vor.u32 %v907, %v908
    %v910 = vshll.u32 2131351028, %v901
    %v911 = vshrl.u32 2102212464, %v902
    %v912 = vor.u32 %v910, %v911
    %v913 = vshll.u32 2102212464, %v901
    %v914 = vshrl.u32 920167782, %v902
    %v915 = vor.u32 %v913, %v914
    %v916 = vshll.u32 920167782, %v901
    %v917 = vshrl.u32 1326507024, %v902
    %v918 = vor.u32 %v916, %v917
    %vm919 = vcmp.lt.s32.totalorder %v900, 1
    %vm920 = vcmp.lt.s32.totalorder %v900, 2
    %vm921 = vcmp.lt.s32.totalorder %v900, 3
    %vm922 = vcmp.lt.s32.totalorder %v900, 4
    %v923 = vsel %vm919, %v903, %v906
    %v924 = vsel %vm922, %v912, 2102212464
    %v925 = vsel %vm921, %v909, %v924
    %v926 = vsel %vm920, %v923, %v925
    %v927 = vsel %vm919, %v906, %v909
    %v928 = vsel %vm922, %v915, 920167782
    %v929 = vsel %vm921, %v912, %v928
    %v930 = vsel %vm920, %v927, %v929
    %v931 = vsel %vm919, %v909, %v912
    %v932 = vsel %vm922, %v918, 1326507024
    %v933 = vsel %vm921, %v915, %v932
    %v934 = vsel %vm920, %v931, %v933
    %v935 = vshll.u32 %v895, 8
    %v936 = vmul.u32.u64.compose %v935, %v934
    %v937 = vextract.low.u32 %v936
    %v938 = vextract.high.u32 %v936
    %v939 = vmul.u32.u64.compose %v935, %v930
    %v940 = vextract.low.u32 %v939
    %v941 = vextract.high.u32 %v939
    %v942 = vmul.u32 %v935, %v926
    %v943 = vadd.s32 %v938, %v940
    %vm944 = vc.u32 %v938, %v940
    %v945 = vadd.s32 %v941, 1
    %v946 = vsel %vm944, %v945, %v941
    %v947 = vadd.s32 %v942, %v946
    %v948 = vadd.s32 %v947, 536870912
    %v949 = vshrl.u32 %v948, 30
    %v950 = vshll.u32 %v949, 30
    %v951 = vsub.s32 %v947, %v950
    %vm952 = vcmp.lt.s32.totalorder %v951, 0
    %v953 = vsub.s32 0, %v951
    %v954 = vsel %vm952, %v953, %v951
    %v955 = vclz %v954
    %v956 = vsub.s32 %v955, 2
    %vm957 = vcmp.gt.s32.totalorder 0, %v956
    %v958 = vsel %vm957, 0, %v956
    %v959 = vsub.s32 32, %v958
    %v960 = vshll.u32 %v951, %v958
    %v961 = vshrl.u32 %v943, %v959
    %v962 = vor.u32 %v960, %v961
    %v963 = vsub.s32 4294967266, %v958
    %v964 = vadd.s32 %v963, 127
    %v965 = vshll.u32 %v964, 23
    %v966 = vor.u32 4788187, %v965
    %v967 = vand.u32 2147483647, %v966
    %v969 = vcvt.s32.f32 %v962
    %v970 = vmul.f32 %v969, %v967
    %v971 = vxor.u32 %v970, 2147483648
    %v972 = vsel %vm889, %v971, %v970
    %v973 = vsub.s32 4, %v949
    %v974 = vsel %vm889, %v973, %v949
    %v975 = vsel %vm888, %v47, %v972
    %v976 = vsel %vm888, 0, %v974
    %v977 = vcosq.f32.pop %v975
    %v978 = vsinq.f32.pop %v975
    %vm979 = vweird.f32 %v47
    %v980 = vadd.s32 %v976, 3
    %v981 = vand.u32 %v980, 3
    %vm982 = vcmp.lt.s32.totalorder %v981, 2
    %vm983 = vcmp.eq.s32.totalorder %v981, 0
    %v984 = vxor.u32 %v978, 2147483648
    %v985 = vsel %vm983, %v977, %v984
    %vm986 = vcmp.eq.s32.totalorder %v981, 2
    %v987 = vxor.u32 %v977, 2147483648
    %v988 = vsel %vm986, %v987, %v978
    %v989 = vsel %vm982, %v985, %v988
    %v990 = vsel %vm979, nan, %v989
    %v991 = vand.u32 2147483647, %v48
    %vm992 = vcmp.le.f32.partialorder %v991, 0.7853982
    %vm993 = vcmp.lt.s32.totalorder %v48, 0
    %v994 = vand.u32 %v48, 2139095040
    %v995 = vshrl.u32 %v994, 23
    %v996 = vsub.s32 %v995, 127
    %v997 = vand.u32 2147483647, %v48
    %v998 = vand.u32 %v997, 8388607
    %v999 = vor.u32 %v998, 8388608
    %v1000 = vsub.s32 0, %v999
    %v1001 = vadd.s32 %v996, 1
    %vm1002 = vcmp.gt.s32.totalorder %v1001, 0
    %v1003 = vsel %vm1002, %v1001, 0
    %v1004 = vshrl.u32 %v1003, 5
    %v1005 = vand.u32 %v1003, 31
    %v1006 = vsub.s32 32, %v1005
    %v1007 = vshrl.u32 683565275, %v1006
    %v1008 = vshll.u32 683565275, %v1005
    %v1009 = vshrl.u32 2475754826, %v1006
    %v1010 = vor.u32 %v1008, %v1009
    %v1011 = vshll.u32 2475754826, %v1005
    %v1012 = vshrl.u32 2131351028, %v1006
    %v1013 = vor.u32 %v1011, %v1012
    %v1014 = vshll.u32 2131351028, %v1005
    %v1015 = vshrl.u32 2102212464, %v1006
    %v1016 = vor.u32 %v1014, %v1015
    %v1017 = vshll.u32 2102212464, %v1005
    %v1018 = vshrl.u32 920167782, %v1006
    %v1019 = vor.u32 %v1017, %v1018
    %v1020 = vshll.u32 920167782, %v1005
    %v1021 = vshrl.u32 1326507024, %v1006
    %v1022 = vor.u32 %v1020, %v1021
    %vm1023 = vcmp.lt.s32.totalorder %v1004, 1
    %vm1024 = vcmp.lt.s32.totalorder %v1004, 2
    %vm1025 = vcmp.lt.s32.totalorder %v1004, 3
    %vm1026 = vcmp.lt.s32.totalorder %v1004, 4
    %v1027 = vsel %vm1023, %v1007, %v1010
    %v1028 = vsel %vm1026, %v1016, 2102212464
    %v1029 = vsel %vm1025, %v1013, %v1028
    %v1030 = vsel %vm1024, %v1027, %v1029
    %v1031 = vsel %vm1023, %v1010, %v1013
    %v1032 = vsel %vm1026, %v1019, 920167782
    %v1033 = vsel %vm1025, %v1016, %v1032
    %v1034 = vsel %vm1024, %v1031, %v1033
    %v1035 = vsel %vm1023, %v1013, %v1016
    %v1036 = vsel %vm1026, %v1022, 1326507024
    %v1037 = vsel %vm1025, %v1019, %v1036
    %v1038 = vsel %vm1024, %v1035, %v1037
    %v1039 = vshll.u32 %v999, 8
    %v1040 = vmul.u32.u64.compose %v1039, %v1038
    %v1041 = vextract.low.u32 %v1040
    %v1042 = vextract.high.u32 %v1040
    %v1043 = vmul.u32.u64.compose %v1039, %v1034
    %v1044 = vextract.low.u32 %v1043
    %v1045 = vextract.high.u32 %v1043
    %v1046 = vmul.u32 %v1039, %v1030
    %v1047 = vadd.s32 %v1042, %v1044
    %vm1048 = vc.u32 %v1042, %v1044
    %v1049 = vadd.s32 %v1045, 1
    %v1050 = vsel %vm1048, %v1049, %v1045
    %v1051 = vadd.s32 %v1046, %v1050
    %v1052 = vadd.s32 %v1051, 536870912
    %v1053 = vshrl.u32 %v1052, 30
    %v1054 = vshll.u32 %v1053, 30
    %v1055 = vsub.s32 %v1051, %v1054
    %vm1056 = vcmp.lt.s32.totalorder %v1055, 0
    %v1057 = vsub.s32 0, %v1055
    %v1058 = vsel %vm1056, %v1057, %v1055
    %v1059 = vclz %v1058
    %v1060 = vsub.s32 %v1059, 2
    %vm1061 = vcmp.gt.s32.totalorder 0, %v1060
    %v1062 = vsel %vm1061, 0, %v1060
    %v1063 = vsub.s32 32, %v1062
    %v1064 = vshll.u32 %v1055, %v1062
    %v1065 = vshrl.u32 %v1047, %v1063
    %v1066 = vor.u32 %v1064, %v1065
    %v1067 = vsub.s32 4294967266, %v1062
    %v1068 = vadd.s32 %v1067, 127
    %v1069 = vshll.u32 %v1068, 23
    %v1070 = vor.u32 4788187, %v1069
    %v1071 = vand.u32 2147483647, %v1070
    %v1073 = vcvt.s32.f32 %v1066
    %v1074 = vmul.f32 %v1073, %v1071
    %v1075 = vxor.u32 %v1074, 2147483648
    %v1076 = vsel %vm993, %v1075, %v1074
    %v1077 = vsub.s32 4, %v1053
    %v1078 = vsel %vm993, %v1077, %v1053
    %v1079 = vsel %vm992, %v48, %v1076
    %v1080 = vsel %vm992, 0, %v1078
    %v1081 = vcosq.f32.pop %v1079
    %v1082 = vsinq.f32.pop %v1079
    %vm1083 = vweird.f32 %v48
    %v1084 = vadd.s32 %v1080, 3
    %v1085 = vand.u32 %v1084, 3
    %vm1086 = vcmp.lt.s32.totalorder %v1085, 2
    %vm1087 = vcmp.eq.s32.totalorder %v1085, 0
    %v1088 = vxor.u32 %v1082, 2147483648
    %v1089 = vsel %vm1087, %v1081, %v1088
    %vm1090 = vcmp.eq.s32.totalorder %v1085, 2
    %v1091 = vxor.u32 %v1081, 2147483648
    %v1092 = vsel %vm1090, %v1091, %v1082
    %v1093 = vsel %vm1086, %v1089, %v1092
    %v1094 = vsel %vm1083, nan, %v1093
    %v1095 = vand.u32 2147483647, %v49
    %vm1096 = vcmp.le.f32.partialorder %v1095, 0.7853982
    %vm1097 = vcmp.lt.s32.totalorder %v49, 0
    %v1098 = vand.u32 %v49, 2139095040
    %v1099 = vshrl.u32 %v1098, 23
    %v1100 = vsub.s32 %v1099, 127
    %v1101 = vand.u32 2147483647, %v49
    %v1102 = vand.u32 %v1101, 8388607
    %v1103 = vor.u32 %v1102, 8388608
    %v1104 = vsub.s32 0, %v1103
    %v1105 = vadd.s32 %v1100, 1
    %vm1106 = vcmp.gt.s32.totalorder %v1105, 0
    %v1107 = vsel %vm1106, %v1105, 0
    %v1108 = vshrl.u32 %v1107, 5
    %v1109 = vand.u32 %v1107, 31
    %v1110 = vsub.s32 32, %v1109
    %v1111 = vshrl.u32 683565275, %v1110
    %v1112 = vshll.u32 683565275, %v1109
    %v1113 = vshrl.u32 2475754826, %v1110
    %v1114 = vor.u32 %v1112, %v1113
    %v1115 = vshll.u32 2475754826, %v1109
    %v1116 = vshrl.u32 2131351028, %v1110
    %v1117 = vor.u32 %v1115, %v1116
    %v1118 = vshll.u32 2131351028, %v1109
    %v1119 = vshrl.u32 2102212464, %v1110
    %v1120 = vor.u32 %v1118, %v1119
    %v1121 = vshll.u32 2102212464, %v1109
    %v1122 = vshrl.u32 920167782, %v1110
    %v1123 = vor.u32 %v1121, %v1122
    %v1124 = vshll.u32 920167782, %v1109
    %v1125 = vshrl.u32 1326507024, %v1110
    %v1126 = vor.u32 %v1124, %v1125
    %vm1127 = vcmp.lt.s32.totalorder %v1108, 1
    %vm1128 = vcmp.lt.s32.totalorder %v1108, 2
    %vm1129 = vcmp.lt.s32.totalorder %v1108, 3
    %vm1130 = vcmp.lt.s32.totalorder %v1108, 4
    %v1131 = vsel %vm1127, %v1111, %v1114
    %v1132 = vsel %vm1130, %v1120, 2102212464
    %v1133 = vsel %vm1129, %v1117, %v1132
    %v1134 = vsel %vm1128, %v1131, %v1133
    %v1135 = vsel %vm1127, %v1114, %v1117
    %v1136 = vsel %vm1130, %v1123, 920167782
    %v1137 = vsel %vm1129, %v1120, %v1136
    %v1138 = vsel %vm1128, %v1135, %v1137
    %v1139 = vsel %vm1127, %v1117, %v1120
    %v1140 = vsel %vm1130, %v1126, 1326507024
    %v1141 = vsel %vm1129, %v1123, %v1140
    %v1142 = vsel %vm1128, %v1139, %v1141
    %v1143 = vshll.u32 %v1103, 8
    %v1144 = vmul.u32.u64.compose %v1143, %v1142
    %v1145 = vextract.low.u32 %v1144
    %v1146 = vextract.high.u32 %v1144
    %v1147 = vmul.u32.u64.compose %v1143, %v1138
    %v1148 = vextract.low.u32 %v1147
    %v1149 = vextract.high.u32 %v1147
    %v1150 = vmul.u32 %v1143, %v1134
    %v1151 = vadd.s32 %v1146, %v1148
    %vm1152 = vc.u32 %v1146, %v1148
    %v1153 = vadd.s32 %v1149, 1
    %v1154 = vsel %vm1152, %v1153, %v1149
    %v1155 = vadd.s32 %v1150, %v1154
    %v1156 = vadd.s32 %v1155, 536870912
    %v1157 = vshrl.u32 %v1156, 30
    %v1158 = vshll.u32 %v1157, 30
    %v1159 = vsub.s32 %v1155, %v1158
    %vm1160 = vcmp.lt.s32.totalorder %v1159, 0
    %v1161 = vsub.s32 0, %v1159
    %v1162 = vsel %vm1160, %v1161, %v1159
    %v1163 = vclz %v1162
    %v1164 = vsub.s32 %v1163, 2
    %vm1165 = vcmp.gt.s32.totalorder 0, %v1164
    %v1166 = vsel %vm1165, 0, %v1164
    %v1167 = vsub.s32 32, %v1166
    %v1168 = vshll.u32 %v1159, %v1166
    %v1169 = vshrl.u32 %v1151, %v1167
    %v1170 = vor.u32 %v1168, %v1169
    %v1171 = vsub.s32 4294967266, %v1166
    %v1172 = vadd.s32 %v1171, 127
    %v1173 = vshll.u32 %v1172, 23
    %v1174 = vor.u32 4788187, %v1173
    %v1175 = vand.u32 2147483647, %v1174
    %v1177 = vcvt.s32.f32 %v1170
    %v1178 = vmul.f32 %v1177, %v1175
    %v1179 = vxor.u32 %v1178, 2147483648
    %v1180 = vsel %vm1097, %v1179, %v1178
    %v1181 = vsub.s32 4, %v1157
    %v1182 = vsel %vm1097, %v1181, %v1157
    %v1183 = vsel %vm1096, %v49, %v1180
    %v1184 = vsel %vm1096, 0, %v1182
    %v1185 = vcosq.f32.pop %v1183
    %v1186 = vsinq.f32.pop %v1183
    %vm1187 = vweird.f32 %v49
    %v1188 = vadd.s32 %v1184, 3
    %v1189 = vand.u32 %v1188, 3
    %vm1190 = vcmp.lt.s32.totalorder %v1189, 2
    %vm1191 = vcmp.eq.s32.totalorder %v1189, 0
    %v1192 = vxor.u32 %v1186, 2147483648
    %v1193 = vsel %vm1191, %v1185, %v1192
    %vm1194 = vcmp.eq.s32.totalorder %v1189, 2
    %v1195 = vxor.u32 %v1185, 2147483648
    %v1196 = vsel %vm1194, %v1195, %v1186
    %v1197 = vsel %vm1190, %v1193, %v1196
    %v1198 = vsel %vm1187, nan, %v1197
    %v1199 = vand.u32 2147483647, %v50
    %vm1200 = vcmp.le.f32.partialorder %v1199, 0.7853982
    %vm1201 = vcmp.lt.s32.totalorder %v50, 0
    %v1202 = vand.u32 %v50, 2139095040
    %v1203 = vshrl.u32 %v1202, 23
    %v1204 = vsub.s32 %v1203, 127
    %v1205 = vand.u32 2147483647, %v50
    %v1206 = vand.u32 %v1205, 8388607
    %v1207 = vor.u32 %v1206, 8388608
    %v1208 = vsub.s32 0, %v1207
    %v1209 = vadd.s32 %v1204, 1
    %vm1210 = vcmp.gt.s32.totalorder %v1209, 0
    %v1211 = vsel %vm1210, %v1209, 0
    %v1212 = vshrl.u32 %v1211, 5
    %v1213 = vand.u32 %v1211, 31
    %v1214 = vsub.s32 32, %v1213
    %v1215 = vshrl.u32 683565275, %v1214
    %v1216 = vshll.u32 683565275, %v1213
    %v1217 = vshrl.u32 2475754826, %v1214
    %v1218 = vor.u32 %v1216, %v1217
    %v1219 = vshll.u32 2475754826, %v1213
    %v1220 = vshrl.u32 2131351028, %v1214
    %v1221 = vor.u32 %v1219, %v1220
    %v1222 = vshll.u32 2131351028, %v1213
    %v1223 = vshrl.u32 2102212464, %v1214
    %v1224 = vor.u32 %v1222, %v1223
    %v1225 = vshll.u32 2102212464, %v1213
    %v1226 = vshrl.u32 920167782, %v1214
    %v1227 = vor.u32 %v1225, %v1226
    %v1228 = vshll.u32 920167782, %v1213
    %v1229 = vshrl.u32 1326507024, %v1214
    %v1230 = vor.u32 %v1228, %v1229
    %vm1231 = vcmp.lt.s32.totalorder %v1212, 1
    %vm1232 = vcmp.lt.s32.totalorder %v1212, 2
    %vm1233 = vcmp.lt.s32.totalorder %v1212, 3
    %vm1234 = vcmp.lt.s32.totalorder %v1212, 4
    %v1235 = vsel %vm1231, %v1215, %v1218
    %v1236 = vsel %vm1234, %v1224, 2102212464
    %v1237 = vsel %vm1233, %v1221, %v1236
    %v1238 = vsel %vm1232, %v1235, %v1237
    %v1239 = vsel %vm1231, %v1218, %v1221
    %v1240 = vsel %vm1234, %v1227, 920167782
    %v1241 = vsel %vm1233, %v1224, %v1240
    %v1242 = vsel %vm1232, %v1239, %v1241
    %v1243 = vsel %vm1231, %v1221, %v1224
    %v1244 = vsel %vm1234, %v1230, 1326507024
    %v1245 = vsel %vm1233, %v1227, %v1244
    %v1246 = vsel %vm1232, %v1243, %v1245
    %v1247 = vshll.u32 %v1207, 8
    %v1248 = vmul.u32.u64.compose %v1247, %v1246
    %v1249 = vextract.low.u32 %v1248
    %v1250 = vextract.high.u32 %v1248
    %v1251 = vmul.u32.u64.compose %v1247, %v1242
    %v1252 = vextract.low.u32 %v1251
    %v1253 = vextract.high.u32 %v1251
    %v1254 = vmul.u32 %v1247, %v1238
    %v1255 = vadd.s32 %v1250, %v1252
    %vm1256 = vc.u32 %v1250, %v1252
    %v1257 = vadd.s32 %v1253, 1
    %v1258 = vsel %vm1256, %v1257, %v1253
    %v1259 = vadd.s32 %v1254, %v1258
    %v1260 = vadd.s32 %v1259, 536870912
    %v1261 = vshrl.u32 %v1260, 30
    %v1262 = vshll.u32 %v1261, 30
    %v1263 = vsub.s32 %v1259, %v1262
    %vm1264 = vcmp.lt.s32.totalorder %v1263, 0
    %v1265 = vsub.s32 0, %v1263
    %v1266 = vsel %vm1264, %v1265, %v1263
    %v1267 = vclz %v1266
    %v1268 = vsub.s32 %v1267, 2
    %vm1269 = vcmp.gt.s32.totalorder 0, %v1268
    %v1270 = vsel %vm1269, 0, %v1268
    %v1271 = vsub.s32 32, %v1270
    %v1272 = vshll.u32 %v1263, %v1270
    %v1273 = vshrl.u32 %v1255, %v1271
    %v1274 = vor.u32 %v1272, %v1273
    %v1275 = vsub.s32 4294967266, %v1270
    %v1276 = vadd.s32 %v1275, 127
    %v1277 = vshll.u32 %v1276, 23
    %v1278 = vor.u32 4788187, %v1277
    %v1279 = vand.u32 2147483647, %v1278
    %v1281 = vcvt.s32.f32 %v1274
    %v1282 = vmul.f32 %v1281, %v1279
    %v1283 = vxor.u32 %v1282, 2147483648
    %v1284 = vsel %vm1201, %v1283, %v1282
    %v1285 = vsub.s32 4, %v1261
    %v1286 = vsel %vm1201, %v1285, %v1261
    %v1287 = vsel %vm1200, %v50, %v1284
    %v1288 = vsel %vm1200, 0, %v1286
    %v1289 = vcosq.f32.pop %v1287
    %v1290 = vsinq.f32.pop %v1287
    %vm1291 = vweird.f32 %v50
    %v1292 = vadd.s32 %v1288, 3
    %v1293 = vand.u32 %v1292, 3
    %vm1294 = vcmp.lt.s32.totalorder %v1293, 2
    %vm1295 = vcmp.eq.s32.totalorder %v1293, 0
    %v1296 = vxor.u32 %v1290, 2147483648
    %v1297 = vsel %vm1295, %v1289, %v1296
    %vm1298 = vcmp.eq.s32.totalorder %v1293, 2
    %v1299 = vxor.u32 %v1289, 2147483648
    %v1300 = vsel %vm1298, %v1299, %v1290
    %v1301 = vsel %vm1294, %v1297, %v1300
    %v1302 = vsel %vm1291, nan, %v1301
    %v1303 = vand.u32 2147483647, %v51
    %vm1304 = vcmp.le.f32.partialorder %v1303, 0.7853982
    %vm1305 = vcmp.lt.s32.totalorder %v51, 0
    %v1306 = vand.u32 %v51, 2139095040
    %v1307 = vshrl.u32 %v1306, 23
    %v1308 = vsub.s32 %v1307, 127
    %v1309 = vand.u32 2147483647, %v51
    %v1310 = vand.u32 %v1309, 8388607
    %v1311 = vor.u32 %v1310, 8388608
    %v1312 = vsub.s32 0, %v1311
    %v1313 = vadd.s32 %v1308, 1
    %vm1314 = vcmp.gt.s32.totalorder %v1313, 0
    %v1315 = vsel %vm1314, %v1313, 0
    %v1316 = vshrl.u32 %v1315, 5
    %v1317 = vand.u32 %v1315, 31
    %v1318 = vsub.s32 32, %v1317
    %v1319 = vshrl.u32 683565275, %v1318
    %v1320 = vshll.u32 683565275, %v1317
    %v1321 = vshrl.u32 2475754826, %v1318
    %v1322 = vor.u32 %v1320, %v1321
    %v1323 = vshll.u32 2475754826, %v1317
    %v1324 = vshrl.u32 2131351028, %v1318
    %v1325 = vor.u32 %v1323, %v1324
    %v1326 = vshll.u32 2131351028, %v1317
    %v1327 = vshrl.u32 2102212464, %v1318
    %v1328 = vor.u32 %v1326, %v1327
    %v1329 = vshll.u32 2102212464, %v1317
    %v1330 = vshrl.u32 920167782, %v1318
    %v1331 = vor.u32 %v1329, %v1330
    %v1332 = vshll.u32 920167782, %v1317
    %v1333 = vshrl.u32 1326507024, %v1318
    %v1334 = vor.u32 %v1332, %v1333
    %vm1335 = vcmp.lt.s32.totalorder %v1316, 1
    %vm1336 = vcmp.lt.s32.totalorder %v1316, 2
    %vm1337 = vcmp.lt.s32.totalorder %v1316, 3
    %vm1338 = vcmp.lt.s32.totalorder %v1316, 4
    %v1339 = vsel %vm1335, %v1319, %v1322
    %v1340 = vsel %vm1338, %v1328, 2102212464
    %v1341 = vsel %vm1337, %v1325, %v1340
    %v1342 = vsel %vm1336, %v1339, %v1341
    %v1343 = vsel %vm1335, %v1322, %v1325
    %v1344 = vsel %vm1338, %v1331, 920167782
    %v1345 = vsel %vm1337, %v1328, %v1344
    %v1346 = vsel %vm1336, %v1343, %v1345
    %v1347 = vsel %vm1335, %v1325, %v1328
    %v1348 = vsel %vm1338, %v1334, 1326507024
    %v1349 = vsel %vm1337, %v1331, %v1348
    %v1350 = vsel %vm1336, %v1347, %v1349
    %v1351 = vshll.u32 %v1311, 8
    %v1352 = vmul.u32.u64.compose %v1351, %v1350
    %v1353 = vextract.low.u32 %v1352
    %v1354 = vextract.high.u32 %v1352
    %v1355 = vmul.u32.u64.compose %v1351, %v1346
    %v1356 = vextract.low.u32 %v1355
    %v1357 = vextract.high.u32 %v1355
    %v1358 = vmul.u32 %v1351, %v1342
    %v1359 = vadd.s32 %v1354, %v1356
    %vm1360 = vc.u32 %v1354, %v1356
    %v1361 = vadd.s32 %v1357, 1
    %v1362 = vsel %vm1360, %v1361, %v1357
    %v1363 = vadd.s32 %v1358, %v1362
    %v1364 = vadd.s32 %v1363, 536870912
    %v1365 = vshrl.u32 %v1364, 30
    %v1366 = vshll.u32 %v1365, 30
    %v1367 = vsub.s32 %v1363, %v1366
    %vm1368 = vcmp.lt.s32.totalorder %v1367, 0
    %v1369 = vsub.s32 0, %v1367
    %v1370 = vsel %vm1368, %v1369, %v1367
    %v1371 = vclz %v1370
    %v1372 = vsub.s32 %v1371, 2
    %vm1373 = vcmp.gt.s32.totalorder 0, %v1372
    %v1374 = vsel %vm1373, 0, %v1372
    %v1375 = vsub.s32 32, %v1374
    %v1376 = vshll.u32 %v1367, %v1374
    %v1377 = vshrl.u32 %v1359, %v1375
    %v1378 = vor.u32 %v1376, %v1377
    %v1379 = vsub.s32 4294967266, %v1374
    %v1380 = vadd.s32 %v1379, 127
    %v1381 = vshll.u32 %v1380, 23
    %v1382 = vor.u32 4788187, %v1381
    %v1383 = vand.u32 2147483647, %v1382
    %v1385 = vcvt.s32.f32 %v1378
    %v1386 = vmul.f32 %v1385, %v1383
    %v1387 = vxor.u32 %v1386, 2147483648
    %v1388 = vsel %vm1305, %v1387, %v1386
    %v1389 = vsub.s32 4, %v1365
    %v1390 = vsel %vm1305, %v1389, %v1365
    %v1391 = vsel %vm1304, %v51, %v1388
    %v1392 = vsel %vm1304, 0, %v1390
    %v1393 = vcosq.f32.pop %v1391
    %v1394 = vsinq.f32.pop %v1391
    %vm1395 = vweird.f32 %v51
    %v1396 = vadd.s32 %v1392, 3
    %v1397 = vand.u32 %v1396, 3
    %vm1398 = vcmp.lt.s32.totalorder %v1397, 2
    %vm1399 = vcmp.eq.s32.totalorder %v1397, 0
    %v1400 = vxor.u32 %v1394, 2147483648
    %v1401 = vsel %vm1399, %v1393, %v1400
    %vm1402 = vcmp.eq.s32.totalorder %v1397, 2
    %v1403 = vxor.u32 %v1393, 2147483648
    %v1404 = vsel %vm1402, %v1403, %v1394
    %v1405 = vsel %vm1398, %v1401, %v1404
    %v1406 = vsel %vm1395, nan, %v1405
    %v1407 = vand.u32 2147483647, %v52
    %vm1408 = vcmp.le.f32.partialorder %v1407, 0.7853982
    %vm1409 = vcmp.lt.s32.totalorder %v52, 0
    %v1410 = vand.u32 %v52, 2139095040
    %v1411 = vshrl.u32 %v1410, 23
    %v1412 = vsub.s32 %v1411, 127
    %v1413 = vand.u32 2147483647, %v52
    %v1414 = vand.u32 %v1413, 8388607
    %v1415 = vor.u32 %v1414, 8388608
    %v1416 = vsub.s32 0, %v1415
    %v1417 = vadd.s32 %v1412, 1
    %vm1418 = vcmp.gt.s32.totalorder %v1417, 0
    %v1419 = vsel %vm1418, %v1417, 0
    %v1420 = vshrl.u32 %v1419, 5
    %v1421 = vand.u32 %v1419, 31
    %v1422 = vsub.s32 32, %v1421
    %v1423 = vshrl.u32 683565275, %v1422
    %v1424 = vshll.u32 683565275, %v1421
    %v1425 = vshrl.u32 2475754826, %v1422
    %v1426 = vor.u32 %v1424, %v1425
    %v1427 = vshll.u32 2475754826, %v1421
    %v1428 = vshrl.u32 2131351028, %v1422
    %v1429 = vor.u32 %v1427, %v1428
    %v1430 = vshll.u32 2131351028, %v1421
    %v1431 = vshrl.u32 2102212464, %v1422
    %v1432 = vor.u32 %v1430, %v1431
    %v1433 = vshll.u32 2102212464, %v1421
    %v1434 = vshrl.u32 920167782, %v1422
    %v1435 = vor.u32 %v1433, %v1434
    %v1436 = vshll.u32 920167782, %v1421
    %v1437 = vshrl.u32 1326507024, %v1422
    %v1438 = vor.u32 %v1436, %v1437
    %vm1439 = vcmp.lt.s32.totalorder %v1420, 1
    %vm1440 = vcmp.lt.s32.totalorder %v1420, 2
    %vm1441 = vcmp.lt.s32.totalorder %v1420, 3
    %vm1442 = vcmp.lt.s32.totalorder %v1420, 4
    %v1443 = vsel %vm1439, %v1423, %v1426
    %v1444 = vsel %vm1442, %v1432, 2102212464
    %v1445 = vsel %vm1441, %v1429, %v1444
    %v1446 = vsel %vm1440, %v1443, %v1445
    %v1447 = vsel %vm1439, %v1426, %v1429
    %v1448 = vsel %vm1442, %v1435, 920167782
    %v1449 = vsel %vm1441, %v1432, %v1448
    %v1450 = vsel %vm1440, %v1447, %v1449
    %v1451 = vsel %vm1439, %v1429, %v1432
    %v1452 = vsel %vm1442, %v1438, 1326507024
    %v1453 = vsel %vm1441, %v1435, %v1452
    %v1454 = vsel %vm1440, %v1451, %v1453
    %v1455 = vshll.u32 %v1415, 8
    %v1456 = vmul.u32.u64.compose %v1455, %v1454
    %v1457 = vextract.low.u32 %v1456
    %v1458 = vextract.high.u32 %v1456
    %v1459 = vmul.u32.u64.compose %v1455, %v1450
    %v1460 = vextract.low.u32 %v1459
    %v1461 = vextract.high.u32 %v1459
    %v1462 = vmul.u32 %v1455, %v1446
    %v1463 = vadd.s32 %v1458, %v1460
    %vm1464 = vc.u32 %v1458, %v1460
    %v1465 = vadd.s32 %v1461, 1
    %v1466 = vsel %vm1464, %v1465, %v1461
    %v1467 = vadd.s32 %v1462, %v1466
    %v1468 = vadd.s32 %v1467, 536870912
    %v1469 = vshrl.u32 %v1468, 30
    %v1470 = vshll.u32 %v1469, 30
    %v1471 = vsub.s32 %v1467, %v1470
    %vm1472 = vcmp.lt.s32.totalorder %v1471, 0
    %v1473 = vsub.s32 0, %v1471
    %v1474 = vsel %vm1472, %v1473, %v1471
    %v1475 = vclz %v1474
    %v1476 = vsub.s32 %v1475, 2
    %vm1477 = vcmp.gt.s32.totalorder 0, %v1476
    %v1478 = vsel %vm1477, 0, %v1476
    %v1479 = vsub.s32 32, %v1478
    %v1480 = vshll.u32 %v1471, %v1478
    %v1481 = vshrl.u32 %v1463, %v1479
    %v1482 = vor.u32 %v1480, %v1481
    %v1483 = vsub.s32 4294967266, %v1478
    %v1484 = vadd.s32 %v1483, 127
    %v1485 = vshll.u32 %v1484, 23
    %v1486 = vor.u32 4788187, %v1485
    %v1487 = vand.u32 2147483647, %v1486
    %v1489 = vcvt.s32.f32 %v1482
    %v1490 = vmul.f32 %v1489, %v1487
    %v1491 = vxor.u32 %v1490, 2147483648
    %v1492 = vsel %vm1409, %v1491, %v1490
    %v1493 = vsub.s32 4, %v1469
    %v1494 = vsel %vm1409, %v1493, %v1469
    %v1495 = vsel %vm1408, %v52, %v1492
    %v1496 = vsel %vm1408, 0, %v1494
    %v1497 = vcosq.f32.pop %v1495
    %v1498 = vsinq.f32.pop %v1495
    %vm1499 = vweird.f32 %v52
    %v1500 = vadd.s32 %v1496, 3
    %v1501 = vand.u32 %v1500, 3
    %vm1502 = vcmp.lt.s32.totalorder %v1501, 2
    %vm1503 = vcmp.eq.s32.totalorder %v1501, 0
    %v1504 = vxor.u32 %v1498, 2147483648
    %v1505 = vsel %vm1503, %v1497, %v1504
    %vm1506 = vcmp.eq.s32.totalorder %v1501, 2
    %v1507 = vxor.u32 %v1497, 2147483648
    %v1508 = vsel %vm1506, %v1507, %v1498
    %v1509 = vsel %vm1502, %v1505, %v1508
    %v1510 = vsel %vm1499, nan, %v1509
    %v1511 = vand.u32 2147483647, %v53
    %vm1512 = vcmp.le.f32.partialorder %v1511, 0.7853982
    %vm1513 = vcmp.lt.s32.totalorder %v53, 0
    %v1514 = vand.u32 %v53, 2139095040
    %v1515 = vshrl.u32 %v1514, 23
    %v1516 = vsub.s32 %v1515, 127
    %v1517 = vand.u32 2147483647, %v53
    %v1518 = vand.u32 %v1517, 8388607
    %v1519 = vor.u32 %v1518, 8388608
    %v1520 = vsub.s32 0, %v1519
    %v1521 = vadd.s32 %v1516, 1
    %vm1522 = vcmp.gt.s32.totalorder %v1521, 0
    %v1523 = vsel %vm1522, %v1521, 0
    %v1524 = vshrl.u32 %v1523, 5
    %v1525 = vand.u32 %v1523, 31
    %v1526 = vsub.s32 32, %v1525
    %v1527 = vshrl.u32 683565275, %v1526
    %v1528 = vshll.u32 683565275, %v1525
    %v1529 = vshrl.u32 2475754826, %v1526
    %v1530 = vor.u32 %v1528, %v1529
    %v1531 = vshll.u32 2475754826, %v1525
    %v1532 = vshrl.u32 2131351028, %v1526
    %v1533 = vor.u32 %v1531, %v1532
    %v1534 = vshll.u32 2131351028, %v1525
    %v1535 = vshrl.u32 2102212464, %v1526
    %v1536 = vor.u32 %v1534, %v1535
    %v1537 = vshll.u32 2102212464, %v1525
    %v1538 = vshrl.u32 920167782, %v1526
    %v1539 = vor.u32 %v1537, %v1538
    %v1540 = vshll.u32 920167782, %v1525
    %v1541 = vshrl.u32 1326507024, %v1526
    %v1542 = vor.u32 %v1540, %v1541
    %vm1543 = vcmp.lt.s32.totalorder %v1524, 1
    %vm1544 = vcmp.lt.s32.totalorder %v1524, 2
    %vm1545 = vcmp.lt.s32.totalorder %v1524, 3
    %vm1546 = vcmp.lt.s32.totalorder %v1524, 4
    %v1547 = vsel %vm1543, %v1527, %v1530
    %v1548 = vsel %vm1546, %v1536, 2102212464
    %v1549 = vsel %vm1545, %v1533, %v1548
    %v1550 = vsel %vm1544, %v1547, %v1549
    %v1551 = vsel %vm1543, %v1530, %v1533
    %v1552 = vsel %vm1546, %v1539, 920167782
    %v1553 = vsel %vm1545, %v1536, %v1552
    %v1554 = vsel %vm1544, %v1551, %v1553
    %v1555 = vsel %vm1543, %v1533, %v1536
    %v1556 = vsel %vm1546, %v1542, 1326507024
    %v1557 = vsel %vm1545, %v1539, %v1556
    %v1558 = vsel %vm1544, %v1555, %v1557
    %v1559 = vshll.u32 %v1519, 8
    %v1560 = vmul.u32.u64.compose %v1559, %v1558
    %v1561 = vextract.low.u32 %v1560
    %v1562 = vextract.high.u32 %v1560
    %v1563 = vmul.u32.u64.compose %v1559, %v1554
    %v1564 = vextract.low.u32 %v1563
    %v1565 = vextract.high.u32 %v1563
    %v1566 = vmul.u32 %v1559, %v1550
    %v1567 = vadd.s32 %v1562, %v1564
    %vm1568 = vc.u32 %v1562, %v1564
    %v1569 = vadd.s32 %v1565, 1
    %v1570 = vsel %vm1568, %v1569, %v1565
    %v1571 = vadd.s32 %v1566, %v1570
    %v1572 = vadd.s32 %v1571, 536870912
    %v1573 = vshrl.u32 %v1572, 30
    %v1574 = vshll.u32 %v1573, 30
    %v1575 = vsub.s32 %v1571, %v1574
    %vm1576 = vcmp.lt.s32.totalorder %v1575, 0
    %v1577 = vsub.s32 0, %v1575
    %v1578 = vsel %vm1576, %v1577, %v1575
    %v1579 = vclz %v1578
    %v1580 = vsub.s32 %v1579, 2
    %vm1581 = vcmp.gt.s32.totalorder 0, %v1580
    %v1582 = vsel %vm1581, 0, %v1580
    %v1583 = vsub.s32 32, %v1582
    %v1584 = vshll.u32 %v1575, %v1582
    %v1585 = vshrl.u32 %v1567, %v1583
    %v1586 = vor.u32 %v1584, %v1585
    %v1587 = vsub.s32 4294967266, %v1582
    %v1588 = vadd.s32 %v1587, 127
    %v1589 = vshll.u32 %v1588, 23
    %v1590 = vor.u32 4788187, %v1589
    %v1591 = vand.u32 2147483647, %v1590
    %v1593 = vcvt.s32.f32 %v1586
    %v1594 = vmul.f32 %v1593, %v1591
    %v1595 = vxor.u32 %v1594, 2147483648
    %v1596 = vsel %vm1513, %v1595, %v1594
    %v1597 = vsub.s32 4, %v1573
    %v1598 = vsel %vm1513, %v1597, %v1573
    %v1599 = vsel %vm1512, %v53, %v1596
    %v1600 = vsel %vm1512, 0, %v1598
    %v1601 = vcosq.f32.pop %v1599
    %v1602 = vsinq.f32.pop %v1599
    %vm1603 = vweird.f32 %v53
    %v1604 = vadd.s32 %v1600, 3
    %v1605 = vand.u32 %v1604, 3
    %vm1606 = vcmp.lt.s32.totalorder %v1605, 2
    %vm1607 = vcmp.eq.s32.totalorder %v1605, 0
    %v1608 = vxor.u32 %v1602, 2147483648
    %v1609 = vsel %vm1607, %v1601, %v1608
    %vm1610 = vcmp.eq.s32.totalorder %v1605, 2
    %v1611 = vxor.u32 %v1601, 2147483648
    %v1612 = vsel %vm1610, %v1611, %v1602
    %v1613 = vsel %vm1606, %v1609, %v1612
    %v1614 = vsel %vm1603, nan, %v1613
    %v1615 = vand.u32 2147483647, %v54
    %vm1616 = vcmp.le.f32.partialorder %v1615, 0.7853982
    %vm1617 = vcmp.lt.s32.totalorder %v54, 0
    %v1618 = vand.u32 %v54, 2139095040
    %v1619 = vshrl.u32 %v1618, 23
    %v1620 = vsub.s32 %v1619, 127
    %v1621 = vand.u32 2147483647, %v54
    %v1622 = vand.u32 %v1621, 8388607
    %v1623 = vor.u32 %v1622, 8388608
    %v1624 = vsub.s32 0, %v1623
    %v1625 = vadd.s32 %v1620, 1
    %vm1626 = vcmp.gt.s32.totalorder %v1625, 0
    %v1627 = vsel %vm1626, %v1625, 0
    %v1628 = vshrl.u32 %v1627, 5
    %v1629 = vand.u32 %v1627, 31
    %v1630 = vsub.s32 32, %v1629
    %v1631 = vshrl.u32 683565275, %v1630
    %v1632 = vshll.u32 683565275, %v1629
    %v1633 = vshrl.u32 2475754826, %v1630
    %v1634 = vor.u32 %v1632, %v1633
    %v1635 = vshll.u32 2475754826, %v1629
    %v1636 = vshrl.u32 2131351028, %v1630
    %v1637 = vor.u32 %v1635, %v1636
    %v1638 = vshll.u32 2131351028, %v1629
    %v1639 = vshrl.u32 2102212464, %v1630
    %v1640 = vor.u32 %v1638, %v1639
    %v1641 = vshll.u32 2102212464, %v1629
    %v1642 = vshrl.u32 920167782, %v1630
    %v1643 = vor.u32 %v1641, %v1642
    %v1644 = vshll.u32 920167782, %v1629
    %v1645 = vshrl.u32 1326507024, %v1630
    %v1646 = vor.u32 %v1644, %v1645
    %vm1647 = vcmp.lt.s32.totalorder %v1628, 1
    %vm1648 = vcmp.lt.s32.totalorder %v1628, 2
    %vm1649 = vcmp.lt.s32.totalorder %v1628, 3
    %vm1650 = vcmp.lt.s32.totalorder %v1628, 4
    %v1651 = vsel %vm1647, %v1631, %v1634
    %v1652 = vsel %vm1650, %v1640, 2102212464
    %v1653 = vsel %vm1649, %v1637, %v1652
    %v1654 = vsel %vm1648, %v1651, %v1653
    %v1655 = vsel %vm1647, %v1634, %v1637
    %v1656 = vsel %vm1650, %v1643, 920167782
    %v1657 = vsel %vm1649, %v1640, %v1656
    %v1658 = vsel %vm1648, %v1655, %v1657
    %v1659 = vsel %vm1647, %v1637, %v1640
    %v1660 = vsel %vm1650, %v1646, 1326507024
    %v1661 = vsel %vm1649, %v1643, %v1660
    %v1662 = vsel %vm1648, %v1659, %v1661
    %v1663 = vshll.u32 %v1623, 8
    %v1664 = vmul.u32.u64.compose %v1663, %v1662
    %v1665 = vextract.low.u32 %v1664
    %v1666 = vextract.high.u32 %v1664
    %v1667 = vmul.u32.u64.compose %v1663, %v1658
    %v1668 = vextract.low.u32 %v1667
    %v1669 = vextract.high.u32 %v1667
    %v1670 = vmul.u32 %v1663, %v1654
    %v1671 = vadd.s32 %v1666, %v1668
    %vm1672 = vc.u32 %v1666, %v1668
    %v1673 = vadd.s32 %v1669, 1
    %v1674 = vsel %vm1672, %v1673, %v1669
    %v1675 = vadd.s32 %v1670, %v1674
    %v1676 = vadd.s32 %v1675, 536870912
    %v1677 = vshrl.u32 %v1676, 30
    %v1678 = vshll.u32 %v1677, 30
    %v1679 = vsub.s32 %v1675, %v1678
    %vm1680 = vcmp.lt.s32.totalorder %v1679, 0
    %v1681 = vsub.s32 0, %v1679
    %v1682 = vsel %vm1680, %v1681, %v1679
    %v1683 = vclz %v1682
    %v1684 = vsub.s32 %v1683, 2
    %vm1685 = vcmp.gt.s32.totalorder 0, %v1684
    %v1686 = vsel %vm1685, 0, %v1684
    %v1687 = vsub.s32 32, %v1686
    %v1688 = vshll.u32 %v1679, %v1686
    %v1689 = vshrl.u32 %v1671, %v1687
    %v1690 = vor.u32 %v1688, %v1689
    %v1691 = vsub.s32 4294967266, %v1686
    %v1692 = vadd.s32 %v1691, 127
    %v1693 = vshll.u32 %v1692, 23
    %v1694 = vor.u32 4788187, %v1693
    %v1695 = vand.u32 2147483647, %v1694
    %v1697 = vcvt.s32.f32 %v1690
    %v1698 = vmul.f32 %v1697, %v1695
    %v1699 = vxor.u32 %v1698, 2147483648
    %v1700 = vsel %vm1617, %v1699, %v1698
    %v1701 = vsub.s32 4, %v1677
    %v1702 = vsel %vm1617, %v1701, %v1677
    %v1703 = vsel %vm1616, %v54, %v1700
    %v1704 = vsel %vm1616, 0, %v1702
    %v1705 = vcosq.f32.pop %v1703
    %v1706 = vsinq.f32.pop %v1703
    %vm1707 = vweird.f32 %v54
    %v1708 = vadd.s32 %v1704, 3
    %v1709 = vand.u32 %v1708, 3
    %vm1710 = vcmp.lt.s32.totalorder %v1709, 2
    %vm1711 = vcmp.eq.s32.totalorder %v1709, 0
    %v1712 = vxor.u32 %v1706, 2147483648
    %v1713 = vsel %vm1711, %v1705, %v1712
    %vm1714 = vcmp.eq.s32.totalorder %v1709, 2
    %v1715 = vxor.u32 %v1705, 2147483648
    %v1716 = vsel %vm1714, %v1715, %v1706
    %v1717 = vsel %vm1710, %v1713, %v1716
    %v1718 = vsel %vm1707, nan, %v1717
    %1719 = vst [vmem:[#allocation5] sm:$0xff] %v158
    %1720 = vst [vmem:[#allocation5 + $0x8] sm:$0xff] %v262
    %1721 = vst [vmem:[#allocation5 + $0x10] sm:$0xff] %v366
    %1722 = vst [vmem:[#allocation5 + $0x18] sm:$0xff] %v470
    %1723 = vst [vmem:[#allocation5 + $0x20] sm:$0xff] %v574
    %1724 = vst [vmem:[#allocation5 + $0x28] sm:$0xff] %v678
    %1725 = vst [vmem:[#allocation5 + $0x30] sm:$0xff] %v782
    %1726 = vst [vmem:[#allocation5 + $0x38] sm:$0xff] %v886
    %1727 = vst [vmem:[#allocation5 + $0x40] sm:$0xff] %v990
    %1728 = vst [vmem:[#allocation5 + $0x48] sm:$0xff] %v1094
    %1729 = vst [vmem:[#allocation5 + $0x50] sm:$0xff] %v1198
    %1730 = vst [vmem:[#allocation5 + $0x58] sm:$0xff] %v1302
    %1731 = vst [vmem:[#allocation5 + $0x60] sm:$0xff] %v1406
    %1732 = vst [vmem:[#allocation5 + $0x68] sm:$0xff] %v1510
    %1733 = vst [vmem:[#allocation5 + $0x70] sm:$0xff] %v1614
    %1734 = vst [vmem:[#allocation5 + $0x78] sm:$0xff] %v1718
    // Predicated region
    $region10: #{_sin_half_slab.1} parent=1 // pred_check
      _
    $region11: #{_sin_half_slab.1} parent=1 // pred_check_branch
      %1736 = sbr.rel (0) target = $region13
    $region12: #{_sin_half_slab.1} parent=1 // pred_region
      %s1738 = ssub.s32 2048, 2048
      %1739 = vsyncadd [#allocation4], %s1738
      %s1740 = sshll.u32 [#allocation5], 4
      %s1741 = int_to_ptr.vmem [resolvable:$true] %s1740
      %1746 = dma.vmem_to_hbm [thread:$0]  %s1741, 2048, %s1, [#allocation4], 128, 128, 8
    $region13: #{_sin_half_slab.1} parent=1 // pred_fallthru
      _
    // Predicated region
    $region14: #{_sin_half_slab.1} parent=1 // pred_check
      _
    $region15: #{_sin_half_slab.1} parent=1 // pred_check_branch
      %1748 = sbr.rel (0) target = $region17
    $region16: #{_sin_half_slab.1} parent=1 // pred_region
      %1749 = dma.done [#allocation4], 2048
    $region17: #{_sin_half_slab.1} parent=1 // pred_fallthru
      _
    %1750 = vsyncpa [#allocation3], 1
    %1751 = vsyncpa [#allocation4], 1

</llo_original>
